<compile_context>
chip_gen: v7x
topology: tpu7x:2x2x1
jax: 0.10.0
libtpu: 0.0.40
codegen_flags: <defaults>
</compile_context>

<pallas_src>
import math
import functools

import jax
import jax.numpy as jnp
from jax import lax
from jax.experimental import pallas as pl
from jax.experimental.pallas import tpu as pltpu


def _mm(a, b):
    """a [m,k] @ b [k,n] with f32 accumulation."""
    return lax.dot_general(a, b, (((1,), (0,)), ((), ())),
                           preferred_element_type=jnp.float32)


def _mm_nt(a, b):
    """a [m,k] @ b[n,k]^T -> [m,n] without an explicit in-kernel transpose."""
    return lax.dot_general(a, b, (((1,), (1,)), ((), ())),
                           preferred_element_type=jnp.float32)


def _cross_attn_kernel(tok_kv_ref, tok_q_ref, wq_ref, wkv_ref, wo_ref, b_ref,
                       o_ref, kv_sc, q_sc, ctx_sc, *,
                       num_heads, head_dim, embed_dim):
    dt = kv_sc.dtype                       # MXU operand dtype (bf16 if requested)
    scale = 1.0 / math.sqrt(head_dim)

    # --- K/V projected ONCE per batch element, cached across all query tiles ---
    @pl.when(pl.program_id(1) == 0)
    def _():
        tok = tok_kv_ref[0]                                    # [T, hidden]
        # One fused, lane-dense projection: [T, hidden] @ [hidden, embed+hidden].
        kv_sc[...] = _mm(tok, wkv_ref[...]).astype(dt)         # [T, embed+hidden]

    # --- Query projection for this tile (1/sqrt(D) folded into Q once) ---------
    q_sc[...] = (_mm(tok_q_ref[0], wq_ref[...]) * scale).astype(dt)   # [tq, embed]

    # --- Per-head attention (num_heads is small & static -> unrolled) ----------
    # Head slices come from scratch refs (static offsets); each head's context is
    # written straight into ctx_sc at its column offset (no concatenate).
    for h in range(num_heads):
        lo, hi = h * head_dim, (h + 1) * head_dim
        q_h = q_sc[:, lo:hi]                                   # [tq, D]
        k_h = kv_sc[:, lo:hi]                                  # [T,  D]
        v_h = kv_sc[:, embed_dim + lo:embed_dim + hi]          # [T,  D]

        s = _mm_nt(q_h, k_h)                                   # [tq, T] f32 scores
        m = jnp.max(s, axis=-1, keepdims=True)
        p = jnp.exp(s - m)                                     # unnormalized probs
        denom = jnp.sum(p, axis=-1, keepdims=True)             # [tq, 1]
        ctx_h = _mm(p.astype(dt), v_h)                         # [tq, D] f32
        # Normalize AFTER the PV matmul (O(tq*D) not O(tq*T)); EUP reciprocal.
        ctx_sc[:, lo:hi] = ctx_h * pl.reciprocal(denom, approx=True)

    # --- Single MXU-dense output projection, f32 accumulation, bias, one cast --
    out = _mm(ctx_sc[...].astype(dt), wo_ref[...]) + b_ref[...].astype(jnp.float32)
    o_ref[0] = out.astype(o_ref.dtype)


def _vmem_limit_bytes():
    """~75% of physical VMEM: ~48 MiB on v7x (64 MiB), ~96 MiB on v5e/v6e (128 MiB)."""
    phys = 64 * 1024 * 1024   # conservative fallback (v7x per-core)
    try:
        info = pltpu.get_tpu_info()
        cap = int(getattr(info, "vmem_capacity_bytes", 0))
        if cap > 0:
            phys = cap
    except Exception:
        pass
    return (phys * 3) // 4


def _pick_q_tile(T, max_tq):
    if T <= max_tq:
        return T
    for cand in (1024, 512, 384, 256, 128):
        if cand <= max_tq and T % cand == 0:
            return cand
    # Ragged T: largest sublane-friendly divisor <= max_tq (never falls back to T).
    for d in range(min(max_tq, T), 0, -1):
        if T % d == 0 and d % 8 == 0:
            return d
    for d in range(min(max_tq, T), 0, -1):
        if T % d == 0:
            return d
    return T


def _derive_q_tile(T, hidden, embed, in_itemsize, op_itemsize, vmem_limit):
    """Pick the largest query tile whose live set fits the derived VMEM budget."""
    fixed = (
        2 * T * hidden * in_itemsize                      # tokens K/V block (2 bufs)
        + T * (embed + hidden) * op_itemsize              # cached K/V scratch
        + 2 * (hidden * embed                             # Wq^T
               + hidden * (embed + hidden)                # fused [Wk|Wv]^T
               + embed * hidden                           # Wout^T
               + hidden) * in_itemsize                    # bias   (all 2 bufs)
    )
    budget = max(vmem_limit - fixed, vmem_limit // 8)
    per_q_row = (
        2 * hidden * in_itemsize                          # Q-tile input block (2 bufs)
        + 2 * hidden * in_itemsize                        # output block (2 bufs)
        + embed * op_itemsize                             # Q scratch
        + embed * 4                                       # ctx scratch (f32)
        + 2 * T * 4                                       # transient score/prob (f32)
    )
    max_tq = int(budget // max(per_q_row, 1))
    max_tq = max(8, min(max_tq, 1024))
    return _pick_q_tile(T, max_tq)


def cross_attention_pallas(tokens, w_q, w_k, w_v, w_out, b_out, *,
                           num_heads, q_tile=None, use_bf16_mxu=False):
    """Forward pass of CrossAttention (self-attention case, context_dim=None).

    tokens : [B, T, hidden]
    w_q    : [embed, hidden]   (nn.Linear layout: [out_features, in_features])
    w_k    : [embed, hidden]
    w_v    : [hidden, hidden]
    w_out  : [hidden, embed]
    b_out  : [hidden]
    """
    B, T, hidden = tokens.shape
    embed = w_q.shape[0]
    assert hidden == embed, "PyTorch rearrange of V requires hidden_dim == embed_dim"
    assert embed % num_heads == 0
    head_dim = embed // num_heads

    in_dt = tokens.dtype
    op_dt = jnp.bfloat16 if (use_bf16_mxu and in_dt == jnp.float32) else in_dt

    vmem_limit = _vmem_limit_bytes()
    if q_tile is None:
        tq = _derive_q_tile(T, hidden, embed,
                            jnp.dtype(in_dt).itemsize, jnp.dtype(op_dt).itemsize,
                            vmem_limit)
    else:
        tq = q_tile
    assert T % tq == 0
    nq = T // tq

    # Pre-transpose (and fuse K/V) in the wrapper so the kernel never transposes.
    wq_t = w_q.T.astype(in_dt)                                     # [hidden, embed]
    wkv_t = jnp.concatenate([w_k.T, w_v.T], axis=1).astype(in_dt)  # [hidden, embed+hidden]
    wo_t = w_out.T.astype(in_dt)                                   # [embed, hidden]
    bias2d = b_out.reshape(1, hidden)

    kernel = functools.partial(_cross_attn_kernel, num_heads=num_heads,
                               head_dim=head_dim, embed_dim=embed)

    return pl.pallas_call(
        kernel,
        out_shape=jax.ShapeDtypeStruct((B, T, hidden), tokens.dtype),
        grid_spec=pltpu.PrefetchScalarGridSpec(
            num_scalar_prefetch=0,
            grid=(B, nq),
            in_specs=[
                pl.BlockSpec((1, T, hidden), lambda b, qi: (b, 0, 0)),          # tokens (K/V src)
                pl.BlockSpec((1, tq, hidden), lambda b, qi: (b, qi, 0)),        # tokens (Q tile)
                pl.BlockSpec((hidden, embed), lambda b, qi: (0, 0)),            # Wq^T (resident)
                pl.BlockSpec((hidden, embed + hidden), lambda b, qi: (0, 0)),   # [Wk|Wv]^T (resident)
                pl.BlockSpec((embed, hidden), lambda b, qi: (0, 0)),            # Wout^T (resident)
                pl.BlockSpec((1, hidden), lambda b, qi: (0, 0)),                # bias
            ],
            out_specs=pl.BlockSpec((1, tq, hidden), lambda b, qi: (b, qi, 0)),
            scratch_shapes=[
                pltpu.VMEM((T, embed + hidden), op_dt),    # cached K|V (per batch elem)
                pltpu.VMEM((tq, embed), op_dt),            # projected Q tile
                pltpu.VMEM((tq, embed), jnp.float32),      # per-head ctx accumulator
            ],
        ),
        compiler_params=pltpu.CompilerParams(
            # B carries the megacore parallelism; qi must be 'arbitrary' so the
            # K/V scratch persists across query tiles of one batch element.
            dimension_semantics=("parallel", "arbitrary"),
            vmem_limit_bytes=vmem_limit,
        ),
    )(tokens, tokens, wq_t, wkv_t, wo_t, bias2d)


def cross_attention_ref(tokens, w_q, w_k, w_v, w_out, b_out, *, num_heads):
    """Pure-JAX reference mirroring the PyTorch forward exactly."""
    B, T, hidden = tokens.shape
    embed = w_q.shape[0]
    head_dim = embed // num_heads

    Q = tokens @ w_q.T            # [B, T, embed]
    K = tokens @ w_k.T            # [B, T, embed]
    V = tokens @ w_v.T            # [B, T, hidden]

    def split_heads(x):           # 'B T (H D) -> (B H) T D'
        return x.reshape(B, T, num_heads, head_dim).transpose(0, 2, 1, 3).reshape(
            B * num_heads, T, head_dim)

    Qh, Kh, Vh = split_heads(Q), split_heads(K), split_heads(V)
    scores = jnp.einsum('btd,bsd->bts', Qh, Kh) / math.sqrt(head_dim)
    attn = jax.nn.softmax(scores, axis=-1)
    ctx = jnp.einsum('bts,bsd->btd', attn, Vh)
    ctx = ctx.reshape(B, num_heads, T, head_dim).transpose(0, 2, 1, 3).reshape(B, T, embed)
    return ctx @ w_out.T + b_out


if __name__ == "__main__":
    # Small shapes consistent with the module: self-attention (context_dim=None).
    batch, seq_len = 2, 16
    hidden_dim = 32
    embed_dim = 32          # must equal hidden_dim (see PyTorch rearrange of V)
    num_heads = 8           # head_dim = 4

    key = jax.random.PRNGKey(0)
    k_tok, k_q, k_k, k_v, k_o, k_b = jax.random.split(key, 6)

    tokens = jax.random.normal(k_tok, (batch, seq_len, hidden_dim), jnp.float32)

    def linear_init(k, out_f, in_f):
        bound = 1.0 / math.sqrt(in_f)
        return jax.random.uniform(k, (out_f, in_f), jnp.float32, -bound, bound)

    w_q = linear_init(k_q, embed_dim, hidden_dim)
    w_k = linear_init(k_k, embed_dim, hidden_dim)
    w_v = linear_init(k_v, hidden_dim, hidden_dim)
    w_out = linear_init(k_o, hidden_dim, embed_dim)
    b_out = jax.random.uniform(k_b, (hidden_dim,), jnp.float32,
                               -1.0 / math.sqrt(embed_dim), 1.0 / math.sqrt(embed_dim))

    ref = cross_attention_ref(tokens, w_q, w_k, w_v, w_out, b_out,
                              num_heads=num_heads)

    # 1) Auto-derived query tile (tq == T, single tile per batch element).
    out = cross_attention_pallas(tokens, w_q, w_k, w_v, w_out, b_out,
                                 num_heads=num_heads)
    out = jax.block_until_ready(out)
    assert out.shape == (batch, seq_len, hidden_dim)
    assert jnp.allclose(out, ref, atol=5e-3, rtol=5e-3), (
        f"max abs err = {jnp.max(jnp.abs(out - ref))}")

    # 2) Forced multi-tile query axis (exercises the K/V caching across qi steps).
    out_tiled = cross_attention_pallas(tokens, w_q, w_k, w_v, w_out, b_out,
                                       num_heads=num_heads, q_tile=8)
    out_tiled = jax.block_until_ready(out_tiled)
    assert jnp.allclose(out_tiled, ref, atol=5e-3, rtol=5e-3), (
        f"max abs err (tiled) = {jnp.max(jnp.abs(out_tiled - ref))}")

    # 3) bf16 MXU operands with f32 accumulation (throughput mode, looser tolerance).
    out_bf16 = cross_attention_pallas(tokens, w_q, w_k, w_v, w_out, b_out,
                                      num_heads=num_heads, use_bf16_mxu=True)
    out_bf16 = jax.block_until_ready(out_bf16)
    assert jnp.allclose(out_bf16, ref, atol=5e-2, rtol=5e-2), (
        f"max abs err (bf16) = {jnp.max(jnp.abs(out_bf16 - ref))}")

    print("KERNEL_OK")
</pallas_src>

<mosaic_0001>
module attributes {stable_mosaic.version = 11 : i64} {
  func.func @_cross_attn_kernel(%arg0: i32, %arg1: i32, %arg2: memref<1x16x32xf32, #tpu.memory_space<vmem>>, %arg3: memref<1x16x32xf32, #tpu.memory_space<vmem>>, %arg4: memref<32x32xf32, #tpu.memory_space<vmem>>, %arg5: memref<32x64xf32, #tpu.memory_space<vmem>>, %arg6: memref<32x32xf32, #tpu.memory_space<vmem>>, %arg7: memref<1x32xf32, #tpu.memory_space<vmem>>, %arg8: memref<1x16x32xf32, #tpu.memory_space<vmem>>, %arg9: memref<16x64xf32, #tpu.memory_space<vmem>>, %arg10: memref<16x32xf32, #tpu.memory_space<vmem>>, %arg11: memref<16x32xf32, #tpu.memory_space<vmem>>) attributes {dimension_semantics = [#tpu.dimension_semantics<parallel>, #tpu.dimension_semantics<arbitrary>], iteration_bounds = array<i64: 2, 1>, scalar_prefetch = 0 : i64, scratch_operands = 3 : i64, tpu.core_type = #tpu.core_type<tc>, window_params = [{transform_indices = @transform_0, window_bounds = array<i64: 1, 16, 32>}, {transform_indices = @transform_1, window_bounds = array<i64: 1, 16, 32>}, {pipeline_mode = #tpu.pipeline_mode<synchronous>, transform_indices = @transform_2, window_bounds = array<i64: 32, 32>}, {pipeline_mode = #tpu.pipeline_mode<synchronous>, transform_indices = @transform_3, window_bounds = array<i64: 32, 64>}, {pipeline_mode = #tpu.pipeline_mode<synchronous>, transform_indices = @transform_4, window_bounds = array<i64: 32, 32>}, {pipeline_mode = #tpu.pipeline_mode<synchronous>, transform_indices = @transform_5, window_bounds = array<i64: 1, 32>}, {transform_indices = @transform_6, window_bounds = array<i64: 1, 16, 32>}]} {
    %c0_i32 = arith.constant 0 : i32
    %0 = arith.cmpi eq, %arg1, %c0_i32 : i32
    %1 = arith.extui %0 : i1 to i32
    %c0_i32_0 = arith.constant 0 : i32
    %2 = arith.cmpi ne, %1, %c0_i32_0 : i32
    scf.if %2 {
      %c0_99 = arith.constant 0 : index
      %c0_100 = arith.constant 0 : index
      %c0_101 = arith.constant 0 : index
      %147 = vector.load %arg2[%c0_99, %c0_100, %c0_101] : memref<1x16x32xf32, #tpu.memory_space<vmem>>, vector<1x16x32xf32>
      %148 = vector.shape_cast %147 : vector<1x16x32xf32> to vector<16x32xf32>
      %c0_102 = arith.constant 0 : index
      %c0_103 = arith.constant 0 : index
      %149 = vector.load %arg5[%c0_102, %c0_103] : memref<32x64xf32, #tpu.memory_space<vmem>>, vector<32x64xf32>
      %cst_104 = arith.constant dense<0.000000e+00> : vector<16x64xf32>
      %150 = tpu.matmul %148, %149, %cst_104 {dimension_numbers = #tpu.dot_dimension_numbers<[1], [0], [0], [1], [0, 0, 1, 1], [], []>} : vector<16x32xf32>, vector<32x64xf32>, vector<16x64xf32> -> vector<16x64xf32>
      %c0_105 = arith.constant 0 : index
      %c0_106 = arith.constant 0 : index
      %151 = vector.load %arg9[%c0_105, %c0_106] : memref<16x64xf32, #tpu.memory_space<vmem>>, vector<16x64xf32>
      tpu.vector_store %arg9[%c0_105, %c0_106], %150 {strides = array<i32>} : memref<16x64xf32, #tpu.memory_space<vmem>>, vector<16x64xf32>,
    } else {
    }
    %c0 = arith.constant 0 : index
    %c0_1 = arith.constant 0 : index
    %c0_2 = arith.constant 0 : index
    %3 = vector.load %arg3[%c0, %c0_1, %c0_2] : memref<1x16x32xf32, #tpu.memory_space<vmem>>, vector<1x16x32xf32>
    %4 = vector.shape_cast %3 : vector<1x16x32xf32> to vector<16x32xf32>
    %c0_3 = arith.constant 0 : index
    %c0_4 = arith.constant 0 : index
    %5 = vector.load %arg4[%c0_3, %c0_4] : memref<32x32xf32, #tpu.memory_space<vmem>>, vector<32x32xf32>
    %cst = arith.constant dense<0.000000e+00> : vector<16x32xf32>
    %6 = tpu.matmul %4, %5, %cst {dimension_numbers = #tpu.dot_dimension_numbers<[1], [0], [0], [1], [0, 0, 1, 1], [], []>} : vector<16x32xf32>, vector<32x32xf32>, vector<16x32xf32> -> vector<16x32xf32>
    %cst_5 = arith.constant 5.000000e-01 : f32
    %7 = vector.broadcast %cst_5 : f32 to vector<16x32xf32>
    %8 = arith.mulf %6, %7 : vector<16x32xf32>
    %c0_6 = arith.constant 0 : index
    %c0_7 = arith.constant 0 : index
    %9 = vector.load %arg10[%c0_6, %c0_7] : memref<16x32xf32, #tpu.memory_space<vmem>>, vector<16x32xf32>
    tpu.vector_store %arg10[%c0_6, %c0_7], %8 {strides = array<i32>} : memref<16x32xf32, #tpu.memory_space<vmem>>, vector<16x32xf32>,
    %c0_8 = arith.constant 0 : index
    %c0_9 = arith.constant 0 : index
    %10 = vector.load %arg10[%c0_8, %c0_9] : memref<16x32xf32, #tpu.memory_space<vmem>>, vector<16x4xf32>
    %c0_10 = arith.constant 0 : index
    %c0_11 = arith.constant 0 : index
    %11 = vector.load %arg9[%c0_10, %c0_11] : memref<16x64xf32, #tpu.memory_space<vmem>>, vector<16x4xf32>
    %c0_12 = arith.constant 0 : index
    %c32 = arith.constant 32 : index
    %12 = vector.load %arg9[%c0_12, %c32] : memref<16x64xf32, #tpu.memory_space<vmem>>, vector<16x4xf32>
    %cst_13 = arith.constant dense<0.000000e+00> : vector<16x16xf32>
    %13 = tpu.matmul %10, %11, %cst_13 {dimension_numbers = #tpu.dot_dimension_numbers<[1], [1], [0], [0], [0, 0, 1, 0], [], []>} : vector<16x4xf32>, vector<16x4xf32>, vector<16x16xf32> -> vector<16x16xf32>
    %cst_14 = arith.constant dense<0xFF800000> : vector<16xf32>
    %14 = vector.multi_reduction <maximumf>, %13, %cst_14 [1] : vector<16x16xf32> to vector<16xf32>
    %15 = vector.shape_cast %14 : vector<16xf32> to vector<16x1xf32>
    %16 = vector.broadcast %15 : vector<16x1xf32> to vector<16x16xf32>
    %17 = arith.subf %13, %16 : vector<16x16xf32>
    %18 = math.exp %17 : vector<16x16xf32>
    %cst_15 = arith.constant dense<0.000000e+00> : vector<16xf32>
    %19 = vector.multi_reduction <add>, %18, %cst_15 [1] : vector<16x16xf32> to vector<16xf32>
    %20 = vector.shape_cast %19 : vector<16xf32> to vector<16x1xf32>
    %cst_16 = arith.constant dense<0.000000e+00> : vector<16x4xf32>
    %21 = tpu.matmul %18, %12, %cst_16 {dimension_numbers = #tpu.dot_dimension_numbers<[1], [0], [0], [1], [0, 0, 1, 1], [], []>} : vector<16x16xf32>, vector<16x4xf32>, vector<16x4xf32> -> vector<16x4xf32>
    %22 = tpu.reciprocal %20 {approx = true} : vector<16x1xf32> -> vector<16x1xf32>
    %23 = vector.broadcast %22 : vector<16x1xf32> to vector<16x4xf32>
    %24 = arith.mulf %21, %23 : vector<16x4xf32>
    %c0_17 = arith.constant 0 : index
    %c0_18 = arith.constant 0 : index
    %25 = vector.load %arg11[%c0_17, %c0_18] : memref<16x32xf32, #tpu.memory_space<vmem>>, vector<16x4xf32>
    tpu.vector_store %arg11[%c0_17, %c0_18], %24 {strides = array<i32>} : memref<16x32xf32, #tpu.memory_space<vmem>>, vector<16x4xf32>,
    %c0_19 = arith.constant 0 : index
    %c4 = arith.constant 4 : index
    %26 = vector.load %arg10[%c0_19, %c4] : memref<16x32xf32, #tpu.memory_space<vmem>>, vector<16x4xf32>
    %c0_20 = arith.constant 0 : index
    %c4_21 = arith.constant 4 : index
    %27 = vector.load %arg9[%c0_20, %c4_21] : memref<16x64xf32, #tpu.memory_space<vmem>>, vector<16x4xf32>
    %c0_22 = arith.constant 0 : index
    %c36 = arith.constant 36 : index
    %28 = vector.load %arg9[%c0_22, %c36] : memref<16x64xf32, #tpu.memory_space<vmem>>, vector<16x4xf32>
    %cst_23 = arith.constant dense<0.000000e+00> : vector<16x16xf32>
    %29 = tpu.matmul %26, %27, %cst_23 {dimension_numbers = #tpu.dot_dimension_numbers<[1], [1], [0], [0], [0, 0, 1, 0], [], []>} : vector<16x4xf32>, vector<16x4xf32>, vector<16x16xf32> -> vector<16x16xf32>
    %cst_24 = arith.constant dense<0xFF800000> : vector<16xf32>
    %30 = vector.multi_reduction <maximumf>, %29, %cst_24 [1] : vector<16x16xf32> to vector<16xf32>
    %31 = vector.shape_cast %30 : vector<16xf32> to vector<16x1xf32>
    %32 = vector.broadcast %31 : vector<16x1xf32> to vector<16x16xf32>
    %33 = arith.subf %29, %32 : vector<16x16xf32>
    %34 = math.exp %33 : vector<16x16xf32>
    %cst_25 = arith.constant dense<0.000000e+00> : vector<16xf32>
    %35 = vector.multi_reduction <add>, %34, %cst_25 [1] : vector<16x16xf32> to vector<16xf32>
    %36 = vector.shape_cast %35 : vector<16xf32> to vector<16x1xf32>
    %cst_26 = arith.constant dense<0.000000e+00> : vector<16x4xf32>
    %37 = tpu.matmul %34, %28, %cst_26 {dimension_numbers = #tpu.dot_dimension_numbers<[1], [0], [0], [1], [0, 0, 1, 1], [], []>} : vector<16x16xf32>, vector<16x4xf32>, vector<16x4xf32> -> vector<16x4xf32>
    %38 = tpu.reciprocal %36 {approx = true} : vector<16x1xf32> -> vector<16x1xf32>
    %39 = vector.broadcast %38 : vector<16x1xf32> to vector<16x4xf32>
    %40 = arith.mulf %37, %39 : vector<16x4xf32>
    %c0_27 = arith.constant 0 : index
    %c4_28 = arith.constant 4 : index
    %41 = vector.load %arg11[%c0_27, %c4_28] : memref<16x32xf32, #tpu.memory_space<vmem>>, vector<16x4xf32>
    tpu.vector_store %arg11[%c0_27, %c4_28], %40 {strides = array<i32>} : memref<16x32xf32, #tpu.memory_space<vmem>>, vector<16x4xf32>,
    %c0_29 = arith.constant 0 : index
    %c8 = arith.constant 8 : index
    %42 = vector.load %arg10[%c0_29, %c8] : memref<16x32xf32, #tpu.memory_space<vmem>>, vector<16x4xf32>
    %c0_30 = arith.constant 0 : index
    %c8_31 = arith.constant 8 : index
    %43 = vector.load %arg9[%c0_30, %c8_31] : memref<16x64xf32, #tpu.memory_space<vmem>>, vector<16x4xf32>
    %c0_32 = arith.constant 0 : index
    %c40 = arith.constant 40 : index
    %44 = vector.load %arg9[%c0_32, %c40] : memref<16x64xf32, #tpu.memory_space<vmem>>, vector<16x4xf32>
    %cst_33 = arith.constant dense<0.000000e+00> : vector<16x16xf32>
    %45 = tpu.matmul %42, %43, %cst_33 {dimension_numbers = #tpu.dot_dimension_numbers<[1], [1], [0], [0], [0, 0, 1, 0], [], []>} : vector<16x4xf32>, vector<16x4xf32>, vector<16x16xf32> -> vector<16x16xf32>
    %cst_34 = arith.constant dense<0xFF800000> : vector<16xf32>
    %46 = vector.multi_reduction <maximumf>, %45, %cst_34 [1] : vector<16x16xf32> to vector<16xf32>
    %47 = vector.shape_cast %46 : vector<16xf32> to vector<16x1xf32>
    %48 = vector.broadcast %47 : vector<16x1xf32> to vector<16x16xf32>
    %49 = arith.subf %45, %48 : vector<16x16xf32>
    %50 = math.exp %49 : vector<16x16xf32>
    %cst_35 = arith.constant dense<0.000000e+00> : vector<16xf32>
    %51 = vector.multi_reduction <add>, %50, %cst_35 [1] : vector<16x16xf32> to vector<16xf32>
    %52 = vector.shape_cast %51 : vector<16xf32> to vector<16x1xf32>
    %cst_36 = arith.constant dense<0.000000e+00> : vector<16x4xf32>
    %53 = tpu.matmul %50, %44, %cst_36 {dimension_numbers = #tpu.dot_dimension_numbers<[1], [0], [0], [1], [0, 0, 1, 1], [], []>} : vector<16x16xf32>, vector<16x4xf32>, vector<16x4xf32> -> vector<16x4xf32>
    %54 = tpu.reciprocal %52 {approx = true} : vector<16x1xf32> -> vector<16x1xf32>
    %55 = vector.broadcast %54 : vector<16x1xf32> to vector<16x4xf32>
    %56 = arith.mulf %53, %55 : vector<16x4xf32>
    %c0_37 = arith.constant 0 : index
    %c8_38 = arith.constant 8 : index
    %57 = vector.load %arg11[%c0_37, %c8_38] : memref<16x32xf32, #tpu.memory_space<vmem>>, vector<16x4xf32>
    tpu.vector_store %arg11[%c0_37, %c8_38], %56 {strides = array<i32>} : memref<16x32xf32, #tpu.memory_space<vmem>>, vector<16x4xf32>,
    %c0_39 = arith.constant 0 : index
    %c12 = arith.constant 12 : index
    %58 = vector.load %arg10[%c0_39, %c12] : memref<16x32xf32, #tpu.memory_space<vmem>>, vector<16x4xf32>
    %c0_40 = arith.constant 0 : index
    %c12_41 = arith.constant 12 : index
    %59 = vector.load %arg9[%c0_40, %c12_41] : memref<16x64xf32, #tpu.memory_space<vmem>>, vector<16x4xf32>
    %c0_42 = arith.constant 0 : index
    %c44 = arith.constant 44 : index
    %60 = vector.load %arg9[%c0_42, %c44] : memref<16x64xf32, #tpu.memory_space<vmem>>, vector<16x4xf32>
    %cst_43 = arith.constant dense<0.000000e+00> : vector<16x16xf32>
    %61 = tpu.matmul %58, %59, %cst_43 {dimension_numbers = #tpu.dot_dimension_numbers<[1], [1], [0], [0], [0, 0, 1, 0], [], []>} : vector<16x4xf32>, vector<16x4xf32>, vector<16x16xf32> -> vector<16x16xf32>
    %cst_44 = arith.constant dense<0xFF800000> : vector<16xf32>
    %62 = vector.multi_reduction <maximumf>, %61, %cst_44 [1] : vector<16x16xf32> to vector<16xf32>
    %63 = vector.shape_cast %62 : vector<16xf32> to vector<16x1xf32>
    %64 = vector.broadcast %63 : vector<16x1xf32> to vector<16x16xf32>
    %65 = arith.subf %61, %64 : vector<16x16xf32>
    %66 = math.exp %65 : vector<16x16xf32>
    %cst_45 = arith.constant dense<0.000000e+00> : vector<16xf32>
    %67 = vector.multi_reduction <add>, %66, %cst_45 [1] : vector<16x16xf32> to vector<16xf32>
    %68 = vector.shape_cast %67 : vector<16xf32> to vector<16x1xf32>
    %cst_46 = arith.constant dense<0.000000e+00> : vector<16x4xf32>
    %69 = tpu.matmul %66, %60, %cst_46 {dimension_numbers = #tpu.dot_dimension_numbers<[1], [0], [0], [1], [0, 0, 1, 1], [], []>} : vector<16x16xf32>, vector<16x4xf32>, vector<16x4xf32> -> vector<16x4xf32>
    %70 = tpu.reciprocal %68 {approx = true} : vector<16x1xf32> -> vector<16x1xf32>
    %71 = vector.broadcast %70 : vector<16x1xf32> to vector<16x4xf32>
    %72 = arith.mulf %69, %71 : vector<16x4xf32>
    %c0_47 = arith.constant 0 : index
    %c12_48 = arith.constant 12 : index
    %73 = vector.load %arg11[%c0_47, %c12_48] : memref<16x32xf32, #tpu.memory_space<vmem>>, vector<16x4xf32>
    tpu.vector_store %arg11[%c0_47, %c12_48], %72 {strides = array<i32>} : memref<16x32xf32, #tpu.memory_space<vmem>>, vector<16x4xf32>,
    %c0_49 = arith.constant 0 : index
    %c16 = arith.constant 16 : index
    %74 = vector.load %arg10[%c0_49, %c16] : memref<16x32xf32, #tpu.memory_space<vmem>>, vector<16x4xf32>
    %c0_50 = arith.constant 0 : index
    %c16_51 = arith.constant 16 : index
    %75 = vector.load %arg9[%c0_50, %c16_51] : memref<16x64xf32, #tpu.memory_space<vmem>>, vector<16x4xf32>
    %c0_52 = arith.constant 0 : index
    %c48 = arith.constant 48 : index
    %76 = vector.load %arg9[%c0_52, %c48] : memref<16x64xf32, #tpu.memory_space<vmem>>, vector<16x4xf32>
    %cst_53 = arith.constant dense<0.000000e+00> : vector<16x16xf32>
    %77 = tpu.matmul %74, %75, %cst_53 {dimension_numbers = #tpu.dot_dimension_numbers<[1], [1], [0], [0], [0, 0, 1, 0], [], []>} : vector<16x4xf32>, vector<16x4xf32>, vector<16x16xf32> -> vector<16x16xf32>
    %cst_54 = arith.constant dense<0xFF800000> : vector<16xf32>
    %78 = vector.multi_reduction <maximumf>, %77, %cst_54 [1] : vector<16x16xf32> to vector<16xf32>
    %79 = vector.shape_cast %78 : vector<16xf32> to vector<16x1xf32>
    %80 = vector.broadcast %79 : vector<16x1xf32> to vector<16x16xf32>
    %81 = arith.subf %77, %80 : vector<16x16xf32>
    %82 = math.exp %81 : vector<16x16xf32>
    %cst_55 = arith.constant dense<0.000000e+00> : vector<16xf32>
    %83 = vector.multi_reduction <add>, %82, %cst_55 [1] : vector<16x16xf32> to vector<16xf32>
    %84 = vector.shape_cast %83 : vector<16xf32> to vector<16x1xf32>
    %cst_56 = arith.constant dense<0.000000e+00> : vector<16x4xf32>
    %85 = tpu.matmul %82, %76, %cst_56 {dimension_numbers = #tpu.dot_dimension_numbers<[1], [0], [0], [1], [0, 0, 1, 1], [], []>} : vector<16x16xf32>, vector<16x4xf32>, vector<16x4xf32> -> vector<16x4xf32>
    %86 = tpu.reciprocal %84 {approx = true} : vector<16x1xf32> -> vector<16x1xf32>
    %87 = vector.broadcast %86 : vector<16x1xf32> to vector<16x4xf32>
    %88 = arith.mulf %85, %87 : vector<16x4xf32>
    %c0_57 = arith.constant 0 : index
    %c16_58 = arith.constant 16 : index
    %89 = vector.load %arg11[%c0_57, %c16_58] : memref<16x32xf32, #tpu.memory_space<vmem>>, vector<16x4xf32>
    tpu.vector_store %arg11[%c0_57, %c16_58], %88 {strides = array<i32>} : memref<16x32xf32, #tpu.memory_space<vmem>>, vector<16x4xf32>,
    %c0_59 = arith.constant 0 : index
    %c20 = arith.constant 20 : index
    %90 = vector.load %arg10[%c0_59, %c20] : memref<16x32xf32, #tpu.memory_space<vmem>>, vector<16x4xf32>
    %c0_60 = arith.constant 0 : index
    %c20_61 = arith.constant 20 : index
    %91 = vector.load %arg9[%c0_60, %c20_61] : memref<16x64xf32, #tpu.memory_space<vmem>>, vector<16x4xf32>
    %c0_62 = arith.constant 0 : index
    %c52 = arith.constant 52 : index
    %92 = vector.load %arg9[%c0_62, %c52] : memref<16x64xf32, #tpu.memory_space<vmem>>, vector<16x4xf32>
    %cst_63 = arith.constant dense<0.000000e+00> : vector<16x16xf32>
    %93 = tpu.matmul %90, %91, %cst_63 {dimension_numbers = #tpu.dot_dimension_numbers<[1], [1], [0], [0], [0, 0, 1, 0], [], []>} : vector<16x4xf32>, vector<16x4xf32>, vector<16x16xf32> -> vector<16x16xf32>
    %cst_64 = arith.constant dense<0xFF800000> : vector<16xf32>
    %94 = vector.multi_reduction <maximumf>, %93, %cst_64 [1] : vector<16x16xf32> to vector<16xf32>
    %95 = vector.shape_cast %94 : vector<16xf32> to vector<16x1xf32>
    %96 = vector.broadcast %95 : vector<16x1xf32> to vector<16x16xf32>
    %97 = arith.subf %93, %96 : vector<16x16xf32>
    %98 = math.exp %97 : vector<16x16xf32>
    %cst_65 = arith.constant dense<0.000000e+00> : vector<16xf32>
    %99 = vector.multi_reduction <add>, %98, %cst_65 [1] : vector<16x16xf32> to vector<16xf32>
    %100 = vector.shape_cast %99 : vector<16xf32> to vector<16x1xf32>
    %cst_66 = arith.constant dense<0.000000e+00> : vector<16x4xf32>
    %101 = tpu.matmul %98, %92, %cst_66 {dimension_numbers = #tpu.dot_dimension_numbers<[1], [0], [0], [1], [0, 0, 1, 1], [], []>} : vector<16x16xf32>, vector<16x4xf32>, vector<16x4xf32> -> vector<16x4xf32>
    %102 = tpu.reciprocal %100 {approx = true} : vector<16x1xf32> -> vector<16x1xf32>
    %103 = vector.broadcast %102 : vector<16x1xf32> to vector<16x4xf32>
    %104 = arith.mulf %101, %103 : vector<16x4xf32>
    %c0_67 = arith.constant 0 : index
    %c20_68 = arith.constant 20 : index
    %105 = vector.load %arg11[%c0_67, %c20_68] : memref<16x32xf32, #tpu.memory_space<vmem>>, vector<16x4xf32>
    tpu.vector_store %arg11[%c0_67, %c20_68], %104 {strides = array<i32>} : memref<16x32xf32, #tpu.memory_space<vmem>>, vector<16x4xf32>,
    %c0_69 = arith.constant 0 : index
    %c24 = arith.constant 24 : index
    %106 = vector.load %arg10[%c0_69, %c24] : memref<16x32xf32, #tpu.memory_space<vmem>>, vector<16x4xf32>
    %c0_70 = arith.constant 0 : index
    %c24_71 = arith.constant 24 : index
    %107 = vector.load %arg9[%c0_70, %c24_71] : memref<16x64xf32, #tpu.memory_space<vmem>>, vector<16x4xf32>
    %c0_72 = arith.constant 0 : index
    %c56 = arith.constant 56 : index
    %108 = vector.load %arg9[%c0_72, %c56] : memref<16x64xf32, #tpu.memory_space<vmem>>, vector<16x4xf32>
    %cst_73 = arith.constant dense<0.000000e+00> : vector<16x16xf32>
    %109 = tpu.matmul %106, %107, %cst_73 {dimension_numbers = #tpu.dot_dimension_numbers<[1], [1], [0], [0], [0, 0, 1, 0], [], []>} : vector<16x4xf32>, vector<16x4xf32>, vector<16x16xf32> -> vector<16x16xf32>
    %cst_74 = arith.constant dense<0xFF800000> : vector<16xf32>
    %110 = vector.multi_reduction <maximumf>, %109, %cst_74 [1] : vector<16x16xf32> to vector<16xf32>
    %111 = vector.shape_cast %110 : vector<16xf32> to vector<16x1xf32>
    %112 = vector.broadcast %111 : vector<16x1xf32> to vector<16x16xf32>
    %113 = arith.subf %109, %112 : vector<16x16xf32>
    %114 = math.exp %113 : vector<16x16xf32>
    %cst_75 = arith.constant dense<0.000000e+00> : vector<16xf32>
    %115 = vector.multi_reduction <add>, %114, %cst_75 [1] : vector<16x16xf32> to vector<16xf32>
    %116 = vector.shape_cast %115 : vector<16xf32> to vector<16x1xf32>
    %cst_76 = arith.constant dense<0.000000e+00> : vector<16x4xf32>
    %117 = tpu.matmul %114, %108, %cst_76 {dimension_numbers = #tpu.dot_dimension_numbers<[1], [0], [0], [1], [0, 0, 1, 1], [], []>} : vector<16x16xf32>, vector<16x4xf32>, vector<16x4xf32> -> vector<16x4xf32>
    %118 = tpu.reciprocal %116 {approx = true} : vector<16x1xf32> -> vector<16x1xf32>
    %119 = vector.broadcast %118 : vector<16x1xf32> to vector<16x4xf32>
    %120 = arith.mulf %117, %119 : vector<16x4xf32>
    %c0_77 = arith.constant 0 : index
    %c24_78 = arith.constant 24 : index
    %121 = vector.load %arg11[%c0_77, %c24_78] : memref<16x32xf32, #tpu.memory_space<vmem>>, vector<16x4xf32>
    tpu.vector_store %arg11[%c0_77, %c24_78], %120 {strides = array<i32>} : memref<16x32xf32, #tpu.memory_space<vmem>>, vector<16x4xf32>,
    %c0_79 = arith.constant 0 : index
    %c28 = arith.constant 28 : index
    %122 = vector.load %arg10[%c0_79, %c28] : memref<16x32xf32, #tpu.memory_space<vmem>>, vector<16x4xf32>
    %c0_80 = arith.constant 0 : index
    %c28_81 = arith.constant 28 : index
    %123 = vector.load %arg9[%c0_80, %c28_81] : memref<16x64xf32, #tpu.memory_space<vmem>>, vector<16x4xf32>
    %c0_82 = arith.constant 0 : index
    %c60 = arith.constant 60 : index
    %124 = vector.load %arg9[%c0_82, %c60] : memref<16x64xf32, #tpu.memory_space<vmem>>, vector<16x4xf32>
    %cst_83 = arith.constant dense<0.000000e+00> : vector<16x16xf32>
    %125 = tpu.matmul %122, %123, %cst_83 {dimension_numbers = #tpu.dot_dimension_numbers<[1], [1], [0], [0], [0, 0, 1, 0], [], []>} : vector<16x4xf32>, vector<16x4xf32>, vector<16x16xf32> -> vector<16x16xf32>
    %cst_84 = arith.constant dense<0xFF800000> : vector<16xf32>
    %126 = vector.multi_reduction <maximumf>, %125, %cst_84 [1] : vector<16x16xf32> to vector<16xf32>
    %127 = vector.shape_cast %126 : vector<16xf32> to vector<16x1xf32>
    %128 = vector.broadcast %127 : vector<16x1xf32> to vector<16x16xf32>
    %129 = arith.subf %125, %128 : vector<16x16xf32>
    %130 = math.exp %129 : vector<16x16xf32>
    %cst_85 = arith.constant dense<0.000000e+00> : vector<16xf32>
    %131 = vector.multi_reduction <add>, %130, %cst_85 [1] : vector<16x16xf32> to vector<16xf32>
    %132 = vector.shape_cast %131 : vector<16xf32> to vector<16x1xf32>
    %cst_86 = arith.constant dense<0.000000e+00> : vector<16x4xf32>
    %133 = tpu.matmul %130, %124, %cst_86 {dimension_numbers = #tpu.dot_dimension_numbers<[1], [0], [0], [1], [0, 0, 1, 1], [], []>} : vector<16x16xf32>, vector<16x4xf32>, vector<16x4xf32> -> vector<16x4xf32>
    %134 = tpu.reciprocal %132 {approx = true} : vector<16x1xf32> -> vector<16x1xf32>
    %135 = vector.broadcast %134 : vector<16x1xf32> to vector<16x4xf32>
    %136 = arith.mulf %133, %135 : vector<16x4xf32>
    %c0_87 = arith.constant 0 : index
    %c28_88 = arith.constant 28 : index
    %137 = vector.load %arg11[%c0_87, %c28_88] : memref<16x32xf32, #tpu.memory_space<vmem>>, vector<16x4xf32>
    tpu.vector_store %arg11[%c0_87, %c28_88], %136 {strides = array<i32>} : memref<16x32xf32, #tpu.memory_space<vmem>>, vector<16x4xf32>,
    %c0_89 = arith.constant 0 : index
    %c0_90 = arith.constant 0 : index
    %138 = vector.load %arg11[%c0_89, %c0_90] : memref<16x32xf32, #tpu.memory_space<vmem>>, vector<16x32xf32>
    %c0_91 = arith.constant 0 : index
    %c0_92 = arith.constant 0 : index
    %139 = vector.load %arg6[%c0_91, %c0_92] : memref<32x32xf32, #tpu.memory_space<vmem>>, vector<32x32xf32>
    %cst_93 = arith.constant dense<0.000000e+00> : vector<16x32xf32>
    %140 = tpu.matmul %138, %139, %cst_93 {dimension_numbers = #tpu.dot_dimension_numbers<[1], [0], [0], [1], [0, 0, 1, 1], [], []>} : vector<16x32xf32>, vector<32x32xf32>, vector<16x32xf32> -> vector<16x32xf32>
    %c0_94 = arith.constant 0 : index
    %c0_95 = arith.constant 0 : index
    %141 = vector.load %arg7[%c0_94, %c0_95] : memref<1x32xf32, #tpu.memory_space<vmem>>, vector<1x32xf32>
    %142 = vector.broadcast %141 : vector<1x32xf32> to vector<16x32xf32>
    %143 = arith.addf %140, %142 : vector<16x32xf32>
    %c0_96 = arith.constant 0 : index
    %c0_97 = arith.constant 0 : index
    %c0_98 = arith.constant 0 : index
    %144 = vector.load %arg8[%c0_96, %c0_97, %c0_98] : memref<1x16x32xf32, #tpu.memory_space<vmem>>, vector<1x16x32xf32>
    %145 = vector.shape_cast %144 : vector<1x16x32xf32> to vector<16x32xf32>
    %146 = vector.shape_cast %143 : vector<16x32xf32> to vector<1x16x32xf32>
    tpu.vector_store %arg8[%c0_96, %c0_97, %c0_98], %146 {strides = array<i32>} : memref<1x16x32xf32, #tpu.memory_space<vmem>>, vector<1x16x32xf32>,
    return
  }
  func.func @transform_0(%arg0: i32, %arg1: i32) -> (i32, i32, i32) {
    %c0_i32 = arith.constant 0 : i32
    %c0_i32_0 = arith.constant 0 : i32
    %c0_i32_1 = arith.constant 0 : i32
    return %arg0, %c0_i32, %c0_i32_0 : i32, i32, i32
  }
  func.func @transform_1(%arg0: i32, %arg1: i32) -> (i32, i32, i32) {
    %c0_i32 = arith.constant 0 : i32
    %c0_i32_0 = arith.constant 0 : i32
    return %arg0, %arg1, %c0_i32 : i32, i32, i32
  }
  func.func @transform_2(%arg0: i32, %arg1: i32) -> (i32, i32) {
    %c0_i32 = arith.constant 0 : i32
    %c0_i32_0 = arith.constant 0 : i32
    %c0_i32_1 = arith.constant 0 : i32
    return %c0_i32, %c0_i32_0 : i32, i32
  }
  func.func @transform_3(%arg0: i32, %arg1: i32) -> (i32, i32) {
    %c0_i32 = arith.constant 0 : i32
    %c0_i32_0 = arith.constant 0 : i32
    %c0_i32_1 = arith.constant 0 : i32
    return %c0_i32, %c0_i32_0 : i32, i32
  }
  func.func @transform_4(%arg0: i32, %arg1: i32) -> (i32, i32) {
    %c0_i32 = arith.constant 0 : i32
    %c0_i32_0 = arith.constant 0 : i32
    %c0_i32_1 = arith.constant 0 : i32
    return %c0_i32, %c0_i32_0 : i32, i32
  }
  func.func @transform_5(%arg0: i32, %arg1: i32) -> (i32, i32) {
    %c0_i32 = arith.constant 0 : i32
    %c0_i32_0 = arith.constant 0 : i32
    %c0_i32_1 = arith.constant 0 : i32
    return %c0_i32, %c0_i32_0 : i32, i32
  }
  func.func @transform_6(%arg0: i32, %arg1: i32) -> (i32, i32, i32) {
    %c0_i32 = arith.constant 0 : i32
    %c0_i32_0 = arith.constant 0 : i32
    return %arg0, %arg1, %c0_i32 : i32, i32, i32
  }
}

</mosaic_0001>

<llo_original>
// kernel: tpu_custom_call.1
$region0: #{tpu_custom_call.1}
  #allocation0 [shape = 'u32[]', space=smem, size = 0x4, offset = 0x4, fixed_abs, tag = 'smem constant byte address 0x4 - core index']
  #allocation1 [shape = 'u32[144,128]{1,0:T(1,128)}', space=vmem, size = 0x12000, scoped, tag = 'internal scratch']
  #allocation2 [shape = 'f32[16,64]{1,0:T(8,128)}', space=vmem, size = 0x2000, scoped, tag = 'scratch operand']
  #allocation3 [shape = 'f32[16,32]{1,0:T(8,128)}', space=vmem, size = 0x2000, scoped, tag = 'scratch operand']
  #allocation4 [shape = 'f32[16,32]{1,0:T(8,128)}', space=vmem, size = 0x2000, scoped, tag = 'scratch operand']
  %s0 = inlined_call_operand.hbm [shape: f32[2,16,32], index: 0, kind: input, shape index: {}]
  %s1 = inlined_call_operand.hbm [shape: f32[2,16,32], index: 1, kind: input, shape index: {}]
  %s2 = inlined_call_operand.hbm [shape: f32[32,32], index: 2, kind: input, shape index: {}]
  %s3 = inlined_call_operand.hbm [shape: f32[32,64], index: 3, kind: input, shape index: {}]
  %s4 = inlined_call_operand.hbm [shape: f32[32,32], index: 4, kind: input, shape index: {}]
  %s5 = inlined_call_operand.vmem [shape: f32[1,32], index: 5, kind: input, shape index: {}]
  %s6 = inlined_call_operand.hbm [shape: f32[2,16,32], index: 6, kind: output, shape index: {}]
  %s7 = sld [smem:[#allocation0]]
  $region81: #{tpu_custom_call.1} parent=0
    _
  %s9 = ssub.s32 1, %s7
  %s10 = scalar_select 0, %s9, %s7
  $region1: #{tpu_custom_call.1} parent=0
    #allocation5 [shape = 'u8[16384]{0}', space=vmem, size = 0x4000, scoped, tag = 'input window, operand 0']
    #allocation6 [shape = 's32[2]{0}', space=sflag, size = 0x8, scoped, tag = 'scoped memory for tpu_custom_call.1']
    #allocation7 [shape = 's32[2]{0}', space=sflag, size = 0x8, scoped, tag = 'scoped memory for tpu_custom_call.1']
    #allocation8 [shape = 'u8[16384]{0}', space=vmem, size = 0x4000, scoped, tag = 'input window, operand 1']
    #allocation9 [shape = 's32[2]{0}', space=sflag, size = 0x8, scoped, tag = 'scoped memory for tpu_custom_call.1']
    #allocation10 [shape = 'u8[16384]{0}', space=vmem, size = 0x4000, scoped, tag = 'input window, operand 2, single buffered']
    #allocation11 [shape = 'u8[16384]{0}', space=vmem, size = 0x4000, scoped, tag = 'input window, operand 3, single buffered']
    #allocation12 [shape = 's32[1]{0}', space=sflag, size = 0x4, scoped, tag = 'scoped memory for tpu_custom_call.1']
    #allocation13 [shape = 'u8[16384]{0}', space=vmem, size = 0x4000, scoped, tag = 'input window, operand 4, single buffered']
    #allocation14 [shape = 'u8[16384]{0}', space=vmem, size = 0x4000, scoped, tag = 'output window, operand 0']
    %11 = vsyncpa [#allocation6], 0
    %s12 = scalar_lea.sflag [#allocation6], 1
    %13 = vsyncpa %s12, 0
    %14 = vsyncpa [#allocation9], 0
    %s15 = scalar_lea.sflag [#allocation9], 1
    %16 = vsyncpa %s15, 0
    %17 = vsyncpa [#allocation12], 0
    %18 = vsyncpa [#allocation7], 0
    %s19 = scalar_lea.sflag [#allocation7], 1
    %20 = vsyncpa %s19, 0
    loop: start=0, step=1, limit=4
    $region2: #{tpu_custom_call.1} parent=1 // loop_pre_header
      _
    $region3: #{tpu_custom_call.1} parent=1 // loop_header
      %s22 = sphi 0, %s26
      %p23 = scmp.ge.s32.totalorder %s22, 4
      %s29 = sphi 0, %s41
      %s30 = sphi 0, %s37
      %s31 = sphi 0, %s29
      %s32 = sphi 0, %s30
      %s33 = sphi 0, %s31
      %s34 = sphi 0, %s32
      %s44 = sphi 0, %s46
      %s47 = sphi 0, %s44
      %s48 = sphi 0, %s47
      %s64 = sphi 0, %s48
      %s72 = sphi 0, %s74
      %s75 = sphi 0, %s72
      %s76 = sphi 0, %s75
      %s92 = sphi 0, %s76
      %s96 = sphi 0, %s96
      %s98 = sphi 0, %s96
      %s99 = sphi 0, %s98
      %s113 = sphi 0, %s99
      %s117 = sphi 0, %s117
      %s119 = sphi 0, %s117
      %s120 = sphi 0, %s119
      %s134 = sphi 0, %s120
      %s138 = sphi 0, %s138
      %s140 = sphi 0, %s138
      %s141 = sphi 0, %s140
      %s155 = sphi 0, %s141
      %s159 = sphi 0, %s159
      %s161 = sphi 0, %s159
      %s162 = sphi 0, %s161
      %s176 = sphi 0, %s162
      %s184 = sphi 0, %s186
      %s187 = sphi 0, %s184
      %s188 = sphi 0, %s187
      %s204 = sphi 0, %s188
    $region4: #{tpu_custom_call.1} parent=1 // loop_header_branch
      %25 = sbr.rel (%p23) target = $region8
    $region5: #{tpu_custom_call.1} parent=1 // loop_body
      %s27 = ssub.s32 %s22, 1
      %s28 = ssub.s32 %s22, 2
      %s35 = sadd.s32 1, %s30
      %p36 = scmp.ge.s32.totalorder %s35, 1
      %s37 = scalar_select %p36, 0, %s35
      %s38 = sadd.s32 1, %s29
      %s39 = scalar_select %p36, %s38, %s29
      %p40 = scmp.ge.s32.totalorder %s39, 2
      %s41 = scalar_select %p40, 0, %s39
      %s42 = ssub.s32 %s29, %s41
      %p43 = scmp.eq.s32.totalorder %s42, 0
      %s45 = sadd.s32 %s44, 1
      %s46 = scalar_select %p43, %s44, %s45
      %p49 = pneg %p43
      %p50 = scmp.eq.s32.totalorder %s22, 1
      %p51 = por %p49, %p50
      %p52 = scmp.ne.s32.totalorder %s44, %s47
      %p53 = scmp.eq.s32.totalorder %s22, 0
      %p54 = por %p52, %p53
      %p55 = scmp.ne.s32.totalorder %s44, %s47
      %p56 = scmp.eq.s32.totalorder %s27, 1
      %p57 = por %p55, %p56
      %p58 = scmp.ne.s32.totalorder %s47, %s48
      %p59 = scmp.eq.s32.totalorder %s27, 0
      %p60 = por %p58, %p59
      %p61 = scmp.ne.s32.totalorder %s47, %s48
      %p62 = scmp.eq.s32.totalorder %s28, 1
      %p63 = por %p61, %p62
      %p65 = scmp.ne.s32.totalorder %s48, %s64
      %p66 = scmp.eq.s32.totalorder %s28, 0
      %p67 = por %p65, %p66
      %s68 = ssub.s32 %s29, %s41
      %s69 = ssub.s32 %s30, %s37
      %s70 = sor.u32 %s68, %s69
      %p71 = scmp.eq.s32.totalorder %s70, 0
      %s73 = sadd.s32 %s72, 1
      %s74 = scalar_select %p71, %s72, %s73
      %p77 = pneg %p71
      %p78 = scmp.eq.s32.totalorder %s22, 1
      %p79 = por %p77, %p78
      %p80 = scmp.ne.s32.totalorder %s72, %s75
      %p81 = scmp.eq.s32.totalorder %s22, 0
      %p82 = por %p80, %p81
      %p83 = scmp.ne.s32.totalorder %s72, %s75
      %p84 = scmp.eq.s32.totalorder %s27, 1
      %p85 = por %p83, %p84
      %p86 = scmp.ne.s32.totalorder %s75, %s76
      %p87 = scmp.eq.s32.totalorder %s27, 0
      %p88 = por %p86, %p87
      %p89 = scmp.ne.s32.totalorder %s75, %s76
      %p90 = scmp.eq.s32.totalorder %s28, 1
      %p91 = por %p89, %p90
      %p93 = scmp.ne.s32.totalorder %s76, %s92
      %p94 = scmp.eq.s32.totalorder %s28, 0
      %p95 = por %p93, %p94
      %s97 = sadd.s32 %s96, 1
      %p100 = scmp.eq.s32.totalorder %s22, 1
      %p101 = scmp.ne.s32.totalorder %s96, %s98
      %p102 = scmp.eq.s32.totalorder %s22, 0
      %p103 = por %p101, %p102
      %p104 = scmp.ne.s32.totalorder %s96, %s98
      %p105 = scmp.eq.s32.totalorder %s27, 1
      %p106 = por %p104, %p105
      %p107 = scmp.ne.s32.totalorder %s98, %s99
      %p108 = scmp.eq.s32.totalorder %s27, 0
      %p109 = por %p107, %p108
      %p110 = scmp.ne.s32.totalorder %s98, %s99
      %p111 = scmp.eq.s32.totalorder %s28, 1
      %p112 = por %p110, %p111
      %p114 = scmp.ne.s32.totalorder %s99, %s113
      %p115 = scmp.eq.s32.totalorder %s28, 0
      %p116 = por %p114, %p115
      %s118 = sadd.s32 %s117, 1
      %p121 = scmp.eq.s32.totalorder %s22, 1
      %p122 = scmp.ne.s32.totalorder %s117, %s119
      %p123 = scmp.eq.s32.totalorder %s22, 0
      %p124 = por %p122, %p123
      %p125 = scmp.ne.s32.totalorder %s117, %s119
      %p126 = scmp.eq.s32.totalorder %s27, 1
      %p127 = por %p125, %p126
      %p128 = scmp.ne.s32.totalorder %s119, %s120
      %p129 = scmp.eq.s32.totalorder %s27, 0
      %p130 = por %p128, %p129
      %p131 = scmp.ne.s32.totalorder %s119, %s120
      %p132 = scmp.eq.s32.totalorder %s28, 1
      %p133 = por %p131, %p132
      %p135 = scmp.ne.s32.totalorder %s120, %s134
      %p136 = scmp.eq.s32.totalorder %s28, 0
      %p137 = por %p135, %p136
      %s139 = sadd.s32 %s138, 1
      %p142 = scmp.eq.s32.totalorder %s22, 1
      %p143 = scmp.ne.s32.totalorder %s138, %s140
      %p144 = scmp.eq.s32.totalorder %s22, 0
      %p145 = por %p143, %p144
      %p146 = scmp.ne.s32.totalorder %s138, %s140
      %p147 = scmp.eq.s32.totalorder %s27, 1
      %p148 = por %p146, %p147
      %p149 = scmp.ne.s32.totalorder %s140, %s141
      %p150 = scmp.eq.s32.totalorder %s27, 0
      %p151 = por %p149, %p150
      %p152 = scmp.ne.s32.totalorder %s140, %s141
      %p153 = scmp.eq.s32.totalorder %s28, 1
      %p154 = por %p152, %p153
      %p156 = scmp.ne.s32.totalorder %s141, %s155
      %p157 = scmp.eq.s32.totalorder %s28, 0
      %p158 = por %p156, %p157
      %s160 = sadd.s32 %s159, 1
      %p163 = scmp.eq.s32.totalorder %s22, 1
      %p164 = scmp.ne.s32.totalorder %s159, %s161
      %p165 = scmp.eq.s32.totalorder %s22, 0
      %p166 = por %p164, %p165
      %p167 = scmp.ne.s32.totalorder %s159, %s161
      %p168 = scmp.eq.s32.totalorder %s27, 1
      %p169 = por %p167, %p168
      %p170 = scmp.ne.s32.totalorder %s161, %s162
      %p171 = scmp.eq.s32.totalorder %s27, 0
      %p172 = por %p170, %p171
      %p173 = scmp.ne.s32.totalorder %s161, %s162
      %p174 = scmp.eq.s32.totalorder %s28, 1
      %p175 = por %p173, %p174
      %p177 = scmp.ne.s32.totalorder %s162, %s176
      %p178 = scmp.eq.s32.totalorder %s28, 0
      %p179 = por %p177, %p178
      %s180 = ssub.s32 %s29, %s41
      %s181 = ssub.s32 %s30, %s37
      %s182 = sor.u32 %s180, %s181
      %p183 = scmp.eq.s32.totalorder %s182, 0
      %s185 = sadd.s32 %s184, 1
      %s186 = scalar_select %p183, %s184, %s185
      %p189 = pneg %p183
      %p190 = scmp.eq.s32.totalorder %s22, 1
      %p191 = por %p189, %p190
      %p192 = scmp.ne.s32.totalorder %s184, %s187
      %p193 = scmp.eq.s32.totalorder %s22, 0
      %p194 = por %p192, %p193
      %p195 = scmp.ne.s32.totalorder %s184, %s187
      %p196 = scmp.eq.s32.totalorder %s27, 1
      %p197 = por %p195, %p196
      %p198 = scmp.ne.s32.totalorder %s187, %s188
      %p199 = scmp.eq.s32.totalorder %s27, 0
      %p200 = por %p198, %p199
      %p201 = scmp.ne.s32.totalorder %s187, %s188
      %p202 = scmp.eq.s32.totalorder %s28, 1
      %p203 = por %p201, %p202
      %p205 = scmp.ne.s32.totalorder %s188, %s204
      %p206 = scmp.eq.s32.totalorder %s28, 0
      %p207 = por %p205, %p206
      %p208 = scmp.le.s32.totalorder 1, %s22
      %p209 = scmp.lt.s32.totalorder %s22, 3
      %p210 = pnand %p208, %p209
      %p211 = pneg %p210
      // Predicated region
      $region9: #{tpu_custom_call.1} parent=5 // pred_check
        _
      $region10: #{tpu_custom_call.1} parent=5 // pred_check_branch
        %213 = sbr.rel (%p210) target = $region12
      $region11: #{tpu_custom_call.1} parent=5 // pred_region
        %s214 = ssub.s32 %s22, 1
        // Predicated region
        $region13: #{tpu_custom_call.1} parent=11 // pred_check
          %p215 = pneg %p109
        $region14: #{tpu_custom_call.1} parent=11 // pred_check_branch
          %217 = sbr.rel (%p215) target = $region16
        $region15: #{tpu_custom_call.1} parent=11 // pred_region
          %s219 = ssub.s32 512, 512
          %220 = vsyncadd [#allocation9], %s219
          %s221 = sshll.u32 [#allocation10], 4
          %s222 = int_to_ptr.vmem [resolvable:$true] %s221
          %227 = dma.hbm_to_vmem [thread:$0]  %s2, 512, %s222, [#allocation9], 128, 128, 8
        $region16: #{tpu_custom_call.1} parent=11 // pred_fallthru
          _
        // Predicated region
        $region17: #{tpu_custom_call.1} parent=11 // pred_check
          %p228 = pneg %p130
        $region18: #{tpu_custom_call.1} parent=11 // pred_check_branch
          %230 = sbr.rel (%p228) target = $region20
        $region19: #{tpu_custom_call.1} parent=11 // pred_region
          %s232 = ssub.s32 512, 512
          %233 = vsyncadd [#allocation12], %s232
          %s234 = sshll.u32 [#allocation11], 4
          %s235 = int_to_ptr.vmem [resolvable:$true] %s234
          %240 = dma.hbm_to_vmem [thread:$0]  %s3, 512, %s235, [#allocation12], 128, 128, 8
        $region20: #{tpu_custom_call.1} parent=11 // pred_fallthru
          _
        // Predicated region
        $region21: #{tpu_custom_call.1} parent=11 // pred_check
          %p241 = pneg %p151
        $region22: #{tpu_custom_call.1} parent=11 // pred_check_branch
          %243 = sbr.rel (%p241) target = $region24
        $region23: #{tpu_custom_call.1} parent=11 // pred_region
          %s245 = ssub.s32 512, 512
          %246 = vsyncadd [#allocation12], %s245
          %s247 = sshll.u32 [#allocation13], 4
          %s248 = int_to_ptr.vmem [resolvable:$true] %s247
          %253 = dma.hbm_to_vmem [thread:$0]  %s4, 512, %s248, [#allocation12], 128, 128, 8
        $region24: #{tpu_custom_call.1} parent=11 // pred_fallthru
          _
        // Predicated region
        $region25: #{tpu_custom_call.1} parent=11 // pred_check
          %p254 = pneg %p172
        $region26: #{tpu_custom_call.1} parent=11 // pred_check_branch
          %256 = sbr.rel (%p254) target = $region28
        $region27: #{tpu_custom_call.1} parent=11 // pred_region
          _
        $region28: #{tpu_custom_call.1} parent=11 // pred_fallthru
          _
      $region12: #{tpu_custom_call.1} parent=5 // pred_fallthru
        _
      %p257 = scmp.lt.s32.totalorder %s22, 2
      // Predicated region
      $region29: #{tpu_custom_call.1} parent=5 // pred_check
        %p258 = pneg %p257
      $region30: #{tpu_custom_call.1} parent=5 // pred_check_branch
        %260 = sbr.rel (%p258) target = $region32
      $region31: #{tpu_custom_call.1} parent=5 // pred_region
        // Predicated region
        $region33: #{tpu_custom_call.1} parent=31 // pred_check
          %p261 = pneg %p54
        $region34: #{tpu_custom_call.1} parent=31 // pred_check_branch
          %263 = sbr.rel (%p261) target = $region36
        $region35: #{tpu_custom_call.1} parent=31 // pred_region
          %s264 = sand.u32 %s44, 1
          %s265 = scalar_lea.sflag [#allocation6], %s264
          %s266 = sand.u32 %s44, 1
          %s267 = smul.addr %s266, 16
          %s268 = scalar_lea.vmem [#allocation5], %s267
          %s270 = ssub.s32 256, 256
          %271 = vsyncadd %s265, %s270
          %s272 = smul.addr %s29, 2
          %s273 = smul.addr %s272, 128
          %s274 = scalar_lea.hbm %s0, %s273
          %s275 = sshll.u32 %s268, 4
          %s276 = int_to_ptr.vmem [resolvable:$true] %s275
          %281 = dma.hbm_to_vmem [thread:$0]  %s274, 256, %s276, %s265, 128, 128, 8
        $region36: #{tpu_custom_call.1} parent=31 // pred_fallthru
          _
        // Predicated region
        $region37: #{tpu_custom_call.1} parent=31 // pred_check
          %p282 = pneg %p82
        $region38: #{tpu_custom_call.1} parent=31 // pred_check_branch
          %284 = sbr.rel (%p282) target = $region40
        $region39: #{tpu_custom_call.1} parent=31 // pred_region
          %s285 = sand.u32 %s22, 1
          %s286 = scalar_lea.sflag [#allocation9], %s285
          %s287 = sand.u32 %s72, 1
          %s288 = smul.addr %s287, 16
          %s289 = scalar_lea.vmem [#allocation8], %s288
          %s290 = smul.u32 2, %s30
          %s292 = ssub.s32 256, 256
          %293 = vsyncadd %s286, %s292
          %s294 = smul.addr %s29, 2
          %s295 = sadd.s32 %s290, %s294
          %s296 = smul.addr %s295, 128
          %s297 = scalar_lea.hbm %s1, %s296
          %s298 = sshll.u32 %s289, 4
          %s299 = int_to_ptr.vmem [resolvable:$true] %s298
          %304 = dma.hbm_to_vmem [thread:$0]  %s297, 256, %s299, %s286, 128, 128, 8
        $region40: #{tpu_custom_call.1} parent=31 // pred_fallthru
          _
      $region32: #{tpu_custom_call.1} parent=5 // pred_fallthru
        _
      %p305 = scmp.le.s32.totalorder 1, %s22
      %p306 = scmp.lt.s32.totalorder %s22, 3
      %p307 = pnand %p305, %p306
      %p308 = pneg %p307
      // Predicated region
      $region41: #{tpu_custom_call.1} parent=5 // pred_check
        _
      $region42: #{tpu_custom_call.1} parent=5 // pred_check_branch
        %310 = sbr.rel (%p307) target = $region44
      $region43: #{tpu_custom_call.1} parent=5 // pred_region
        %s311 = ssub.s32 %s22, 1
        %s312 = sand.u32 %s47, 1
        %s313 = scalar_lea.sflag [#allocation6], %s312
        %s314 = sand.u32 %s47, 1
        %s315 = smul.addr %s314, 16
        %s316 = scalar_lea.vmem [#allocation5], %s315
        // Predicated region
        $region45: #{tpu_custom_call.1} parent=43 // pred_check
          %p317 = pneg %p60
        $region46: #{tpu_custom_call.1} parent=43 // pred_check_branch
          %319 = sbr.rel (%p317) target = $region48
        $region47: #{tpu_custom_call.1} parent=43 // pred_region
          %320 = dma.done %s313, 256
        $region48: #{tpu_custom_call.1} parent=43 // pred_fallthru
          _
        %s321 = sand.u32 %s27, 1
        %s322 = scalar_lea.sflag [#allocation9], %s321
        %s323 = sand.u32 %s75, 1
        %s324 = smul.addr %s323, 16
        %s325 = scalar_lea.vmem [#allocation8], %s324
        // Predicated region
        $region49: #{tpu_custom_call.1} parent=43 // pred_check
          %p326 = pneg %p88
        $region50: #{tpu_custom_call.1} parent=43 // pred_check_branch
          %328 = sbr.rel (%p326) target = $region52
        $region51: #{tpu_custom_call.1} parent=43 // pred_region
          %329 = dma.done %s322, 256
        $region52: #{tpu_custom_call.1} parent=43 // pred_fallthru
          _
        // Predicated region
        $region53: #{tpu_custom_call.1} parent=43 // pred_check
          %p330 = pneg %p109
        $region54: #{tpu_custom_call.1} parent=43 // pred_check_branch
          %332 = sbr.rel (%p330) target = $region56
        $region55: #{tpu_custom_call.1} parent=43 // pred_region
          %333 = dma.done [#allocation9], 512
        $region56: #{tpu_custom_call.1} parent=43 // pred_fallthru
          _
        // Predicated region
        $region57: #{tpu_custom_call.1} parent=43 // pred_check
          %p334 = pneg %p130
        $region58: #{tpu_custom_call.1} parent=43 // pred_check_branch
          %336 = sbr.rel (%p334) target = $region60
        $region59: #{tpu_custom_call.1} parent=43 // pred_region
          %337 = dma.done [#allocation12], 512
        $region60: #{tpu_custom_call.1} parent=43 // pred_fallthru
          _
        // Predicated region
        $region61: #{tpu_custom_call.1} parent=43 // pred_check
          %p338 = pneg %p151
        $region62: #{tpu_custom_call.1} parent=43 // pred_check_branch
          %340 = sbr.rel (%p338) target = $region64
        $region63: #{tpu_custom_call.1} parent=43 // pred_region
          %341 = dma.done [#allocation12], 512
        $region64: #{tpu_custom_call.1} parent=43 // pred_fallthru
          _
        %s342 = sand.u32 %s47, 1
        %s343 = scalar_lea.sflag [#allocation6], %s342
        %s344 = sand.u32 %s47, 1
        %s345 = smul.addr %s344, 16
        %s346 = scalar_lea.vmem [#allocation5], %s345
        %p347 = pneg %p60
        %p348 = pneg %p57
        %s349 = sand.u32 %s27, 1
        %s350 = scalar_lea.sflag [#allocation9], %s349
        %s351 = sand.u32 %s75, 1
        %s352 = smul.addr %s351, 16
        %s353 = scalar_lea.vmem [#allocation8], %s352
        %p354 = pneg %p88
        %p355 = pneg %p85
        %p356 = pneg %p109
        %p357 = pneg %p106
        %p358 = pneg %p130
        %p359 = pneg %p127
        %p360 = pneg %p151
        %p361 = pneg %p148
        %p362 = pneg %p172
        %p363 = pneg %p169
        %p364 = pneg %p200
        %p365 = pneg %p197
        %s366 = sand.u32 %s187, 1
        %s367 = scalar_lea.sflag [#allocation7], %s366
        %s368 = sand.u32 %s187, 1
        %s369 = smul.addr %s368, 16
        %s370 = scalar_lea.vmem [#allocation14], %s369
        %s371 = smul.u32 2, %s32
        %s372 = smul.u32 2, %s32
        %p373 = scmp.eq.s32.totalorder %s32, 0
        // Predicated region
        $region65: #{tpu_custom_call.1} parent=43 // pred_check
          %p374 = pneg %p373
        $region66: #{tpu_custom_call.1} parent=43 // pred_check_branch
          %376 = sbr.rel (%p374) target = $region68
        $region67: #{tpu_custom_call.1} parent=43 // pred_region
          %v377 = vld [vmem:[%s316] sm:$0xff]
          %v378 = vld [vmem:[%s316 + $0x8] sm:$0xff]
          %v379 = vld [vmem:[#allocation11] sm:$0xff]
          %v380 = vld [vmem:[#allocation11 + $0x8] sm:$0xff]
          %v381 = vld [vmem:[#allocation11 + $0x10] sm:$0xff]
          %v382 = vld [vmem:[#allocation11 + $0x18] sm:$0xff]
          %vm383 = vcmask 261120
          %v385 = vsel %vm383, %v377, 0
          %v388 = vsel %vm383, %v378, 0
          %390 = vmatprep.subr.mxu0 0.0
          %391 = vmatpush1.msra.mxu0 %v379
          %392 = vmatprep.subr.mxu0 0.0
          %393 = vmatpush1.msra.mxu0 %v380
          %394 = vmatprep.subr.mxu0 0.0
          %395 = vmatpush1.msra.mxu0 %v381
          %396 = vmatprep.subr.mxu0 0.0
          %397 = vmatpush1.msra.mxu0 %v382
          %398 = vmatprep.subr.mxu0 0.0
          %399 = vmatpush1.msra.mxu0 0.0
          %400 = vmatprep.subr.mxu0 0.0
          %401 = vmatpush1.msra.mxu0 0.0
          %402 = vmatprep.subr.mxu0 0.0
          %403 = vmatpush1.msra.mxu0 0.0
          %404 = vmatprep.subr.mxu0 0.0
          %405 = vmatpush1.msra.mxu0 0.0
          %406 = vmatprep.subr.mxu0 0.0
          %407 = vmatpush1.msra.mxu0 0.0
          %408 = vmatprep.subr.mxu0 0.0
          %409 = vmatpush1.msra.mxu0 0.0
          %410 = vmatprep.subr.mxu0 0.0
          %411 = vmatpush1.msra.mxu0 0.0
          %412 = vmatprep.subr.mxu0 0.0
          %413 = vmatpush1.msra.mxu0 0.0
          %414 = vmatprep.subr.mxu0 0.0
          %415 = vmatpush1.msra.mxu0 0.0
          %416 = vmatprep.subr.mxu0 0.0
          %417 = vmatpush1.msra.mxu0 0.0
          %418 = vmatprep.subr.mxu0 0.0
          %419 = vmatpush1.msra.mxu0 0.0
          %420 = vmatprep.subr.mxu0 0.0
          %421 = vmatpush1.msra.mxu0 0.0
          %422 = vmatprep.subr.mxu0 0.0
          %423 = vmatpush1.msra.mxu0 0.0
          %424 = vmatprep.subr.mxu0 0.0
          %425 = vmatpush1.msra.mxu0 0.0
          %426 = vmatprep.subr.mxu0 0.0
          %427 = vmatpush1.msra.mxu0 0.0
          %428 = vmatprep.subr.mxu0 0.0
          %429 = vmatpush1.msra.mxu0 0.0
          %430 = vmatprep.subr.mxu0 0.0
          %431 = vmatpush1.msra.mxu0 0.0
          %432 = vmatprep.subr.mxu0 0.0
          %433 = vmatpush1.msra.mxu0 0.0
          %434 = vmatprep.subr.mxu0 0.0
          %435 = vmatpush1.msra.mxu0 0.0
          %436 = vmatprep.subr.mxu0 0.0
          %437 = vmatpush1.msra.mxu0 0.0
          %438 = vmatprep.subr.mxu0 0.0
          %439 = vmatpush1.msra.mxu0 0.0
          %440 = vmatprep.subr.mxu0 0.0
          %441 = vmatpush1.msra.mxu0 0.0
          %442 = vmatprep.subr.mxu0 0.0
          %443 = vmatpush1.msra.mxu0 0.0
          %444 = vmatprep.subr.mxu0 0.0
          %445 = vmatpush1.msra.mxu0 0.0
          %446 = vmatprep.subr.mxu0 0.0
          %447 = vmatpush1.msra.mxu0 0.0
          %448 = vmatprep.subr.mxu0 0.0
          %449 = vmatpush1.msra.mxu0 0.0
          %450 = vmatprep.subr.mxu0 0.0
          %451 = vmatpush1.msra.mxu0 0.0
          %452 = vmatprep.subr.mxu0 0.0
          %453 = vmatpush1.msra.mxu0 0.0
          %454 = vmatprep.mubr.f32.mxu0 0.0
          %455 = vmatmul.mubr.f32.gmra.mrb[0].mxu0 %v385
          %v456 = vpop.f32.mrb[0].mxu0
          %v457 = vadd.f32 0.0, %v456
          %v458 = vpop.f32.mrb[0].mxu0
          %459 = vmatprep.mubr.f32.mxu0 0.0
          %460 = vmatmul.mubr.f32.gmra.mrb[0].mxu0 %v388
          %v461 = vpop.f32.mrb[0].mxu0
          %v462 = vadd.f32 0.0, %v461
          %v463 = vpop.f32.mrb[0].mxu0
          %464 = vdwg.mxu0
          %vm465 = vcmask 523264
          %466 = vst.msk [vmem:[#allocation2] sm:$0xff] %vm465, %v457
          %467 = vst.msk [vmem:[#allocation2 + $0x8] sm:$0xff] %vm465, %v462
        $region68: #{tpu_custom_call.1} parent=43 // pred_fallthru
          _
        %v468 = vld [vmem:[%s325] sm:$0xff]
        %v469 = vld [vmem:[%s325 + $0x8] sm:$0xff]
        %v470 = vld [vmem:[#allocation10] sm:$0xff]
        %v471 = vld [vmem:[#allocation10 + $0x8] sm:$0xff]
        %v472 = vld [vmem:[#allocation10 + $0x10] sm:$0xff]
        %v473 = vld [vmem:[#allocation10 + $0x18] sm:$0xff]
        %vm474 = vcmask 261120
        %v476 = vsel %vm474, %v468, 0
        %v479 = vsel %vm474, %v469, 0
        %481 = vmatprep.subr.mxu0 0.0
        %482 = vmatpush1.msra.mxu0 %v470
        %483 = vmatprep.subr.mxu0 0.0
        %484 = vmatpush1.msra.mxu0 %v471
        %485 = vmatprep.subr.mxu0 0.0
        %486 = vmatpush1.msra.mxu0 %v472
        %487 = vmatprep.subr.mxu0 0.0
        %488 = vmatpush1.msra.mxu0 %v473
        %489 = vmatprep.subr.mxu0 0.0
        %490 = vmatpush1.msra.mxu0 0.0
        %491 = vmatprep.subr.mxu0 0.0
        %492 = vmatpush1.msra.mxu0 0.0
        %493 = vmatprep.subr.mxu0 0.0
        %494 = vmatpush1.msra.mxu0 0.0
        %495 = vmatprep.subr.mxu0 0.0
        %496 = vmatpush1.msra.mxu0 0.0
        %497 = vmatprep.subr.mxu0 0.0
        %498 = vmatpush1.msra.mxu0 0.0
        %499 = vmatprep.subr.mxu0 0.0
        %500 = vmatpush1.msra.mxu0 0.0
        %501 = vmatprep.subr.mxu0 0.0
        %502 = vmatpush1.msra.mxu0 0.0
        %503 = vmatprep.subr.mxu0 0.0
        %504 = vmatpush1.msra.mxu0 0.0
        %505 = vmatprep.subr.mxu0 0.0
        %506 = vmatpush1.msra.mxu0 0.0
        %507 = vmatprep.subr.mxu0 0.0
        %508 = vmatpush1.msra.mxu0 0.0
        %509 = vmatprep.subr.mxu0 0.0
        %510 = vmatpush1.msra.mxu0 0.0
        %511 = vmatprep.subr.mxu0 0.0
        %512 = vmatpush1.msra.mxu0 0.0
        %513 = vmatprep.subr.mxu0 0.0
        %514 = vmatpush1.msra.mxu0 0.0
        %515 = vmatprep.subr.mxu0 0.0
        %516 = vmatpush1.msra.mxu0 0.0
        %517 = vmatprep.subr.mxu0 0.0
        %518 = vmatpush1.msra.mxu0 0.0
        %519 = vmatprep.subr.mxu0 0.0
        %520 = vmatpush1.msra.mxu0 0.0
        %521 = vmatprep.subr.mxu0 0.0
        %522 = vmatpush1.msra.mxu0 0.0
        %523 = vmatprep.subr.mxu0 0.0
        %524 = vmatpush1.msra.mxu0 0.0
        %525 = vmatprep.subr.mxu0 0.0
        %526 = vmatpush1.msra.mxu0 0.0
        %527 = vmatprep.subr.mxu0 0.0
        %528 = vmatpush1.msra.mxu0 0.0
        %529 = vmatprep.subr.mxu0 0.0
        %530 = vmatpush1.msra.mxu0 0.0
        %531 = vmatprep.subr.mxu0 0.0
        %532 = vmatpush1.msra.mxu0 0.0
        %533 = vmatprep.subr.mxu0 0.0
        %534 = vmatpush1.msra.mxu0 0.0
        %535 = vmatprep.subr.mxu0 0.0
        %536 = vmatpush1.msra.mxu0 0.0
        %537 = vmatprep.subr.mxu0 0.0
        %538 = vmatpush1.msra.mxu0 0.0
        %539 = vmatprep.subr.mxu0 0.0
        %540 = vmatpush1.msra.mxu0 0.0
        %541 = vmatprep.subr.mxu0 0.0
        %542 = vmatpush1.msra.mxu0 0.0
        %543 = vmatprep.subr.mxu0 0.0
        %544 = vmatpush1.msra.mxu0 0.0
        %545 = vmatprep.mubr.f32.mxu0 0.0
        %546 = vmatmul.mubr.f32.gmra.mrb[0].mxu0 %v476
        %v547 = vpop.f32.mrb[0].mxu0
        %v548 = vadd.f32 0.0, %v547
        %v549 = vpop.f32.mrb[0].mxu0
        %550 = vmatprep.mubr.f32.mxu0 0.0
        %551 = vmatmul.mubr.f32.gmra.mrb[0].mxu0 %v479
        %v552 = vpop.f32.mrb[0].mxu0
        %v553 = vadd.f32 0.0, %v552
        %v554 = vpop.f32.mrb[0].mxu0
        %555 = vdwg.mxu0
        %v556 = vmul.f32 %v548, 0.5
        %v557 = vmul.f32 %v553, 0.5
        %558 = vst.msk [vmem:[#allocation3] sm:$0xff] %vm474, %v556
        %559 = vst.msk [vmem:[#allocation3 + $0x8] sm:$0xff] %vm474, %v557
        %v560 = vld [vmem:[#allocation3] sm:$0xff]
        %v561 = vld [vmem:[#allocation3 + $0x8] sm:$0xff]
        %v562 = vld [vmem:[#allocation2] sm:$0xff]
        %v563 = vld [vmem:[#allocation2 + $0x8] sm:$0xff]
        %vm564 = vcmask 31744
        %v566 = vsel %vm564, %v560, 0
        %v569 = vsel %vm564, %v561, 0
        %v572 = vsel %vm564, %v562, 0
        %v575 = vsel %vm564, %v563, 0
        %577 = vmatprep.subr.mxu0 0.0
        %578 = vmatpush1.xpose.msra.mxu0 %v572
        %579 = vmatprep.subr.mxu0 0.0
        %580 = vmatpush1.xpose.msra.mxu0 %v575
        %581 = vmatprep.subr.mxu0 0.0
        %582 = vmatpush1.xpose.msra.mxu0 0.0
        %583 = vmatprep.subr.mxu0 0.0
        %584 = vmatpush1.xpose.msra.mxu0 0.0
        %585 = vmatprep.subr.mxu0 0.0
        %586 = vmatpush1.xpose.msra.mxu0 0.0
        %587 = vmatprep.subr.mxu0 0.0
        %588 = vmatpush1.xpose.msra.mxu0 0.0
        %589 = vmatprep.subr.mxu0 0.0
        %590 = vmatpush1.xpose.msra.mxu0 0.0
        %591 = vmatprep.subr.mxu0 0.0
        %592 = vmatpush1.xpose.msra.mxu0 0.0
        %593 = vmatprep.subr.mxu0 0.0
        %594 = vmatpush1.xpose.msra.mxu0 0.0
        %595 = vmatprep.subr.mxu0 0.0
        %596 = vmatpush1.xpose.msra.mxu0 0.0
        %597 = vmatprep.subr.mxu0 0.0
        %598 = vmatpush1.xpose.msra.mxu0 0.0
        %599 = vmatprep.subr.mxu0 0.0
        %600 = vmatpush1.xpose.msra.mxu0 0.0
        %601 = vmatprep.subr.mxu0 0.0
        %602 = vmatpush1.xpose.msra.mxu0 0.0
        %603 = vmatprep.subr.mxu0 0.0
        %604 = vmatpush1.xpose.msra.mxu0 0.0
        %605 = vmatprep.subr.mxu0 0.0
        %606 = vmatpush1.xpose.msra.mxu0 0.0
        %607 = vmatprep.subr.mxu0 0.0
        %608 = vmatpush1.xpose.msra.mxu0 0.0
        %609 = vmatprep.subr.mxu0 0.0
        %610 = vmatpush1.xpose.msra.mxu0 0.0
        %611 = vmatprep.subr.mxu0 0.0
        %612 = vmatpush1.xpose.msra.mxu0 0.0
        %613 = vmatprep.subr.mxu0 0.0
        %614 = vmatpush1.xpose.msra.mxu0 0.0
        %615 = vmatprep.subr.mxu0 0.0
        %616 = vmatpush1.xpose.msra.mxu0 0.0
        %617 = vmatprep.subr.mxu0 0.0
        %618 = vmatpush1.xpose.msra.mxu0 0.0
        %619 = vmatprep.subr.mxu0 0.0
        %620 = vmatpush1.xpose.msra.mxu0 0.0
        %621 = vmatprep.subr.mxu0 0.0
        %622 = vmatpush1.xpose.msra.mxu0 0.0
        %623 = vmatprep.subr.mxu0 0.0
        %624 = vmatpush1.xpose.msra.mxu0 0.0
        %625 = vmatprep.subr.mxu0 0.0
        %626 = vmatpush1.xpose.msra.mxu0 0.0
        %627 = vmatprep.subr.mxu0 0.0
        %628 = vmatpush1.xpose.msra.mxu0 0.0
        %629 = vmatprep.subr.mxu0 0.0
        %630 = vmatpush1.xpose.msra.mxu0 0.0
        %631 = vmatprep.subr.mxu0 0.0
        %632 = vmatpush1.xpose.msra.mxu0 0.0
        %633 = vmatprep.subr.mxu0 0.0
        %634 = vmatpush1.xpose.msra.mxu0 0.0
        %635 = vmatprep.subr.mxu0 0.0
        %636 = vmatpush1.xpose.msra.mxu0 0.0
        %637 = vmatprep.subr.mxu0 0.0
        %638 = vmatpush1.xpose.msra.mxu0 0.0
        %639 = vmatprep.subr.mxu0 0.0
        %640 = vmatpush1.xpose.msra.mxu0 0.0
        %641 = vmatprep.mubr.f32.mxu0 0.0
        %642 = vmatmul.mubr.f32.gmra.mrb[0].mxu0 %v566
        %v643 = vpop.f32.mrb[0].mxu0
        %v644 = vadd.f32 0.0, %v643
        %v645 = vpop.f32.mrb[0].mxu0
        %646 = vmatprep.mubr.f32.mxu0 0.0
        %647 = vmatmul.mubr.f32.gmra.mrb[0].mxu0 %v569
        %v648 = vpop.f32.mrb[0].mxu0
        %v649 = vadd.f32 0.0, %v648
        %v650 = vpop.f32.mrb[0].mxu0
        %651 = vdwg.mxu0
        %vm652 = vcmask 130048
        %v653 = vsel %vm652, %v644, -inf
        %654 = vmax.xlane.f32.xlu0 %v653
        %v655 = vpop.xlane.xlu0 %654
        %v656 = vsel %vm652, %v649, -inf
        %657 = vmax.xlane.f32.xlu0 %v656
        %v658 = vpop.xlane.xlu0 %657
        %v659 = vsub.f32 %v644, %v655
        %v660 = vsub.f32 %v649, %v658
        %v661 = vmul.f32 %v659, 1.442695
        %v662 = vpow.pop %v661
        %v663 = vmul.f32 %v660, 1.442695
        %v664 = vpow.pop %v663
        %v665 = vsel %vm652, %v662, 0.0
        %666 = vadd.xlane.f32.xlu0 %v665
        %v667 = vpop.xlane.xlu0 %666
        %v668 = vsel %vm652, %v664, 0.0
        %669 = vadd.xlane.f32.xlu0 %v668
        %v670 = vpop.xlane.xlu0 %669
        %671 = vrot.lane.b32.xlu0 %v562, 96
        %v672 = vpop.permute.xlu0 %671
        %673 = vrot.lane.b32.xlu0 %v563, 96
        %v674 = vpop.permute.xlu0 %673
        %v678 = vsel %vm652, %v662, 0
        %v681 = vsel %vm652, %v664, 0
        %683 = vmatprep.subr.mxu0 0.0
        %684 = vmatpush1.msra.mxu0 %v672
        %685 = vmatprep.subr.mxu0 0.0
        %686 = vmatpush1.msra.mxu0 %v674
        %687 = vmatprep.subr.mxu0 0.0
        %688 = vmatpush1.msra.mxu0 0.0
        %689 = vmatprep.subr.mxu0 0.0
        %690 = vmatpush1.msra.mxu0 0.0
        %691 = vmatprep.subr.mxu0 0.0
        %692 = vmatpush1.msra.mxu0 0.0
        %693 = vmatprep.subr.mxu0 0.0
        %694 = vmatpush1.msra.mxu0 0.0
        %695 = vmatprep.subr.mxu0 0.0
        %696 = vmatpush1.msra.mxu0 0.0
        %697 = vmatprep.subr.mxu0 0.0
        %698 = vmatpush1.msra.mxu0 0.0
        %699 = vmatprep.subr.mxu0 0.0
        %700 = vmatpush1.msra.mxu0 0.0
        %701 = vmatprep.subr.mxu0 0.0
        %702 = vmatpush1.msra.mxu0 0.0
        %703 = vmatprep.subr.mxu0 0.0
        %704 = vmatpush1.msra.mxu0 0.0
        %705 = vmatprep.subr.mxu0 0.0
        %706 = vmatpush1.msra.mxu0 0.0
        %707 = vmatprep.subr.mxu0 0.0
        %708 = vmatpush1.msra.mxu0 0.0
        %709 = vmatprep.subr.mxu0 0.0
        %710 = vmatpush1.msra.mxu0 0.0
        %711 = vmatprep.subr.mxu0 0.0
        %712 = vmatpush1.msra.mxu0 0.0
        %713 = vmatprep.subr.mxu0 0.0
        %714 = vmatpush1.msra.mxu0 0.0
        %715 = vmatprep.subr.mxu0 0.0
        %716 = vmatpush1.msra.mxu0 0.0
        %717 = vmatprep.subr.mxu0 0.0
        %718 = vmatpush1.msra.mxu0 0.0
        %719 = vmatprep.subr.mxu0 0.0
        %720 = vmatpush1.msra.mxu0 0.0
        %721 = vmatprep.subr.mxu0 0.0
        %722 = vmatpush1.msra.mxu0 0.0
        %723 = vmatprep.subr.mxu0 0.0
        %724 = vmatpush1.msra.mxu0 0.0
        %725 = vmatprep.subr.mxu0 0.0
        %726 = vmatpush1.msra.mxu0 0.0
        %727 = vmatprep.subr.mxu0 0.0
        %728 = vmatpush1.msra.mxu0 0.0
        %729 = vmatprep.subr.mxu0 0.0
        %730 = vmatpush1.msra.mxu0 0.0
        %731 = vmatprep.subr.mxu0 0.0
        %732 = vmatpush1.msra.mxu0 0.0
        %733 = vmatprep.subr.mxu0 0.0
        %734 = vmatpush1.msra.mxu0 0.0
        %735 = vmatprep.subr.mxu0 0.0
        %736 = vmatpush1.msra.mxu0 0.0
        %737 = vmatprep.subr.mxu0 0.0
        %738 = vmatpush1.msra.mxu0 0.0
        %739 = vmatprep.subr.mxu0 0.0
        %740 = vmatpush1.msra.mxu0 0.0
        %741 = vmatprep.subr.mxu0 0.0
        %742 = vmatpush1.msra.mxu0 0.0
        %743 = vmatprep.subr.mxu0 0.0
        %744 = vmatpush1.msra.mxu0 0.0
        %745 = vmatprep.subr.mxu0 0.0
        %746 = vmatpush1.msra.mxu0 0.0
        %747 = vmatprep.mubr.f32.mxu0 0.0
        %748 = vmatmul.mubr.f32.gmra.mrb[0].mxu0 %v678
        %v749 = vpop.f32.mrb[0].mxu0
        %v750 = vadd.f32 0.0, %v749
        %v751 = vpop.f32.mrb[0].mxu0
        %752 = vmatprep.mubr.f32.mxu0 0.0
        %753 = vmatmul.mubr.f32.gmra.mrb[0].mxu0 %v681
        %v754 = vpop.f32.mrb[0].mxu0
        %v755 = vadd.f32 0.0, %v754
        %v756 = vpop.f32.mrb[0].mxu0
        %757 = vdwg.mxu0
        %v758 = vrcp.pop %v667
        %v759 = vrcp.pop %v670
        %v760 = vmul.f32 %v750, %v758
        %v761 = vmul.f32 %v755, %v759
        %762 = vst.msk [vmem:[#allocation4] sm:$0xff] %vm564, %v760
        %763 = vst.msk [vmem:[#allocation4 + $0x8] sm:$0xff] %vm564, %v761
        %v764 = vld [vmem:[#allocation3] sm:$0xff]
        %v765 = vld [vmem:[#allocation3 + $0x8] sm:$0xff]
        %v766 = vld [vmem:[#allocation2] sm:$0xff]
        %v767 = vld [vmem:[#allocation2 + $0x8] sm:$0xff]
        %770 = vrot.lane.b32.xlu0 %v764, 124
        %v771 = vpop.permute.xlu0 %770
        %772 = vrot.lane.b32.xlu0 %v765, 124
        %v773 = vpop.permute.xlu0 %772
        %776 = vrot.lane.b32.xlu0 %v766, 124
        %v777 = vpop.permute.xlu0 %776
        %778 = vrot.lane.b32.xlu0 %v767, 124
        %v779 = vpop.permute.xlu0 %778
        %v780 = vsel %vm564, %v771, 0
        %v782 = vsel %vm564, %v773, 0
        %v784 = vsel %vm564, %v777, 0
        %v786 = vsel %vm564, %v779, 0
        %788 = vmatprep.subr.mxu0 0.0
        %789 = vmatpush1.xpose.msra.mxu0 %v784
        %790 = vmatprep.subr.mxu0 0.0
        %791 = vmatpush1.xpose.msra.mxu0 %v786
        %792 = vmatprep.subr.mxu0 0.0
        %793 = vmatpush1.xpose.msra.mxu0 0.0
        %794 = vmatprep.subr.mxu0 0.0
        %795 = vmatpush1.xpose.msra.mxu0 0.0
        %796 = vmatprep.subr.mxu0 0.0
        %797 = vmatpush1.xpose.msra.mxu0 0.0
        %798 = vmatprep.subr.mxu0 0.0
        %799 = vmatpush1.xpose.msra.mxu0 0.0
        %800 = vmatprep.subr.mxu0 0.0
        %801 = vmatpush1.xpose.msra.mxu0 0.0
        %802 = vmatprep.subr.mxu0 0.0
        %803 = vmatpush1.xpose.msra.mxu0 0.0
        %804 = vmatprep.subr.mxu0 0.0
        %805 = vmatpush1.xpose.msra.mxu0 0.0
        %806 = vmatprep.subr.mxu0 0.0
        %807 = vmatpush1.xpose.msra.mxu0 0.0
        %808 = vmatprep.subr.mxu0 0.0
        %809 = vmatpush1.xpose.msra.mxu0 0.0
        %810 = vmatprep.subr.mxu0 0.0
        %811 = vmatpush1.xpose.msra.mxu0 0.0
        %812 = vmatprep.subr.mxu0 0.0
        %813 = vmatpush1.xpose.msra.mxu0 0.0
        %814 = vmatprep.subr.mxu0 0.0
        %815 = vmatpush1.xpose.msra.mxu0 0.0
        %816 = vmatprep.subr.mxu0 0.0
        %817 = vmatpush1.xpose.msra.mxu0 0.0
        %818 = vmatprep.subr.mxu0 0.0
        %819 = vmatpush1.xpose.msra.mxu0 0.0
        %820 = vmatprep.subr.mxu0 0.0
        %821 = vmatpush1.xpose.msra.mxu0 0.0
        %822 = vmatprep.subr.mxu0 0.0
        %823 = vmatpush1.xpose.msra.mxu0 0.0
        %824 = vmatprep.subr.mxu0 0.0
        %825 = vmatpush1.xpose.msra.mxu0 0.0
        %826 = vmatprep.subr.mxu0 0.0
        %827 = vmatpush1.xpose.msra.mxu0 0.0
        %828 = vmatprep.subr.mxu0 0.0
        %829 = vmatpush1.xpose.msra.mxu0 0.0
        %830 = vmatprep.subr.mxu0 0.0
        %831 = vmatpush1.xpose.msra.mxu0 0.0
        %832 = vmatprep.subr.mxu0 0.0
        %833 = vmatpush1.xpose.msra.mxu0 0.0
        %834 = vmatprep.subr.mxu0 0.0
        %835 = vmatpush1.xpose.msra.mxu0 0.0
        %836 = vmatprep.subr.mxu0 0.0
        %837 = vmatpush1.xpose.msra.mxu0 0.0
        %838 = vmatprep.subr.mxu0 0.0
        %839 = vmatpush1.xpose.msra.mxu0 0.0
        %840 = vmatprep.subr.mxu0 0.0
        %841 = vmatpush1.xpose.msra.mxu0 0.0
        %842 = vmatprep.subr.mxu0 0.0
        %843 = vmatpush1.xpose.msra.mxu0 0.0
        %844 = vmatprep.subr.mxu0 0.0
        %845 = vmatpush1.xpose.msra.mxu0 0.0
        %846 = vmatprep.subr.mxu0 0.0
        %847 = vmatpush1.xpose.msra.mxu0 0.0
        %848 = vmatprep.subr.mxu0 0.0
        %849 = vmatpush1.xpose.msra.mxu0 0.0
        %850 = vmatprep.subr.mxu0 0.0
        %851 = vmatpush1.xpose.msra.mxu0 0.0
        %852 = vmatprep.mubr.f32.mxu0 0.0
        %853 = vmatmul.mubr.f32.gmra.mrb[0].mxu0 %v780
        %v854 = vpop.f32.mrb[0].mxu0
        %v855 = vadd.f32 0.0, %v854
        %v856 = vpop.f32.mrb[0].mxu0
        %857 = vmatprep.mubr.f32.mxu0 0.0
        %858 = vmatmul.mubr.f32.gmra.mrb[0].mxu0 %v782
        %v859 = vpop.f32.mrb[0].mxu0
        %v860 = vadd.f32 0.0, %v859
        %v861 = vpop.f32.mrb[0].mxu0
        %862 = vdwg.mxu0
        %v863 = vsel %vm652, %v855, -inf
        %864 = vmax.xlane.f32.xlu0 %v863
        %v865 = vpop.xlane.xlu0 %864
        %v866 = vsel %vm652, %v860, -inf
        %867 = vmax.xlane.f32.xlu0 %v866
        %v868 = vpop.xlane.xlu0 %867
        %v869 = vsub.f32 %v855, %v865
        %v870 = vsub.f32 %v860, %v868
        %v871 = vmul.f32 %v869, 1.442695
        %v872 = vpow.pop %v871
        %v873 = vmul.f32 %v870, 1.442695
        %v874 = vpow.pop %v873
        %v875 = vsel %vm652, %v872, 0.0
        %876 = vadd.xlane.f32.xlu0 %v875
        %v877 = vpop.xlane.xlu0 %876
        %v878 = vsel %vm652, %v874, 0.0
        %879 = vadd.xlane.f32.xlu0 %v878
        %v880 = vpop.xlane.xlu0 %879
        %881 = vrot.lane.b32.xlu0 %v766, 92
        %v882 = vpop.permute.xlu0 %881
        %883 = vrot.lane.b32.xlu0 %v767, 92
        %v884 = vpop.permute.xlu0 %883
        %v888 = vsel %vm652, %v872, 0
        %v891 = vsel %vm652, %v874, 0
        %893 = vmatprep.subr.mxu0 0.0
        %894 = vmatpush1.msra.mxu0 %v882
        %895 = vmatprep.subr.mxu0 0.0
        %896 = vmatpush1.msra.mxu0 %v884
        %897 = vmatprep.subr.mxu0 0.0
        %898 = vmatpush1.msra.mxu0 0.0
        %899 = vmatprep.subr.mxu0 0.0
        %900 = vmatpush1.msra.mxu0 0.0
        %901 = vmatprep.subr.mxu0 0.0
        %902 = vmatpush1.msra.mxu0 0.0
        %903 = vmatprep.subr.mxu0 0.0
        %904 = vmatpush1.msra.mxu0 0.0
        %905 = vmatprep.subr.mxu0 0.0
        %906 = vmatpush1.msra.mxu0 0.0
        %907 = vmatprep.subr.mxu0 0.0
        %908 = vmatpush1.msra.mxu0 0.0
        %909 = vmatprep.subr.mxu0 0.0
        %910 = vmatpush1.msra.mxu0 0.0
        %911 = vmatprep.subr.mxu0 0.0
        %912 = vmatpush1.msra.mxu0 0.0
        %913 = vmatprep.subr.mxu0 0.0
        %914 = vmatpush1.msra.mxu0 0.0
        %915 = vmatprep.subr.mxu0 0.0
        %916 = vmatpush1.msra.mxu0 0.0
        %917 = vmatprep.subr.mxu0 0.0
        %918 = vmatpush1.msra.mxu0 0.0
        %919 = vmatprep.subr.mxu0 0.0
        %920 = vmatpush1.msra.mxu0 0.0
        %921 = vmatprep.subr.mxu0 0.0
        %922 = vmatpush1.msra.mxu0 0.0
        %923 = vmatprep.subr.mxu0 0.0
        %924 = vmatpush1.msra.mxu0 0.0
        %925 = vmatprep.subr.mxu0 0.0
        %926 = vmatpush1.msra.mxu0 0.0
        %927 = vmatprep.subr.mxu0 0.0
        %928 = vmatpush1.msra.mxu0 0.0
        %929 = vmatprep.subr.mxu0 0.0
        %930 = vmatpush1.msra.mxu0 0.0
        %931 = vmatprep.subr.mxu0 0.0
        %932 = vmatpush1.msra.mxu0 0.0
        %933 = vmatprep.subr.mxu0 0.0
        %934 = vmatpush1.msra.mxu0 0.0
        %935 = vmatprep.subr.mxu0 0.0
        %936 = vmatpush1.msra.mxu0 0.0
        %937 = vmatprep.subr.mxu0 0.0
        %938 = vmatpush1.msra.mxu0 0.0
        %939 = vmatprep.subr.mxu0 0.0
        %940 = vmatpush1.msra.mxu0 0.0
        %941 = vmatprep.subr.mxu0 0.0
        %942 = vmatpush1.msra.mxu0 0.0
        %943 = vmatprep.subr.mxu0 0.0
        %944 = vmatpush1.msra.mxu0 0.0
        %945 = vmatprep.subr.mxu0 0.0
        %946 = vmatpush1.msra.mxu0 0.0
        %947 = vmatprep.subr.mxu0 0.0
        %948 = vmatpush1.msra.mxu0 0.0
        %949 = vmatprep.subr.mxu0 0.0
        %950 = vmatpush1.msra.mxu0 0.0
        %951 = vmatprep.subr.mxu0 0.0
        %952 = vmatpush1.msra.mxu0 0.0
        %953 = vmatprep.subr.mxu0 0.0
        %954 = vmatpush1.msra.mxu0 0.0
        %955 = vmatprep.subr.mxu0 0.0
        %956 = vmatpush1.msra.mxu0 0.0
        %957 = vmatprep.mubr.f32.mxu0 0.0
        %958 = vmatmul.mubr.f32.gmra.mrb[0].mxu0 %v888
        %v959 = vpop.f32.mrb[0].mxu0
        %v960 = vadd.f32 0.0, %v959
        %v961 = vpop.f32.mrb[0].mxu0
        %962 = vmatprep.mubr.f32.mxu0 0.0
        %963 = vmatmul.mubr.f32.gmra.mrb[0].mxu0 %v891
        %v964 = vpop.f32.mrb[0].mxu0
        %v965 = vadd.f32 0.0, %v964
        %v966 = vpop.f32.mrb[0].mxu0
        %967 = vdwg.mxu0
        %v968 = vrcp.pop %v877
        %v969 = vrcp.pop %v880
        %v970 = vmul.f32 %v960, %v968
        %v971 = vmul.f32 %v965, %v969
        %974 = vrot.lane.b32.xlu0 %v970, 4
        %v975 = vpop.permute.xlu0 %974
        %976 = vrot.lane.b32.xlu0 %v971, 4
        %v977 = vpop.permute.xlu0 %976
        %vm980 = vcmask 64544
        %981 = vst.msk [vmem:[#allocation4] sm:$0xff] %vm980, %v975
        %982 = vst.msk [vmem:[#allocation4 + $0x8] sm:$0xff] %vm980, %v977
        %v983 = vld [vmem:[#allocation3] sm:$0xff]
        %v984 = vld [vmem:[#allocation3 + $0x8] sm:$0xff]
        %v985 = vld [vmem:[#allocation2] sm:$0xff]
        %v986 = vld [vmem:[#allocation2 + $0x8] sm:$0xff]
        %989 = vrot.lane.b32.xlu0 %v983, 120
        %v990 = vpop.permute.xlu0 %989
        %991 = vrot.lane.b32.xlu0 %v984, 120
        %v992 = vpop.permute.xlu0 %991
        %995 = vrot.lane.b32.xlu0 %v985, 120
        %v996 = vpop.permute.xlu0 %995
        %997 = vrot.lane.b32.xlu0 %v986, 120
        %v998 = vpop.permute.xlu0 %997
        %v999 = vsel %vm564, %v990, 0
        %v1001 = vsel %vm564, %v992, 0
        %v1003 = vsel %vm564, %v996, 0
        %v1005 = vsel %vm564, %v998, 0
        %1007 = vmatprep.subr.mxu0 0.0
        %1008 = vmatpush1.xpose.msra.mxu0 %v1003
        %1009 = vmatprep.subr.mxu0 0.0
        %1010 = vmatpush1.xpose.msra.mxu0 %v1005
        %1011 = vmatprep.subr.mxu0 0.0
        %1012 = vmatpush1.xpose.msra.mxu0 0.0
        %1013 = vmatprep.subr.mxu0 0.0
        %1014 = vmatpush1.xpose.msra.mxu0 0.0
        %1015 = vmatprep.subr.mxu0 0.0
        %1016 = vmatpush1.xpose.msra.mxu0 0.0
        %1017 = vmatprep.subr.mxu0 0.0
        %1018 = vmatpush1.xpose.msra.mxu0 0.0
        %1019 = vmatprep.subr.mxu0 0.0
        %1020 = vmatpush1.xpose.msra.mxu0 0.0
        %1021 = vmatprep.subr.mxu0 0.0
        %1022 = vmatpush1.xpose.msra.mxu0 0.0
        %1023 = vmatprep.subr.mxu0 0.0
        %1024 = vmatpush1.xpose.msra.mxu0 0.0
        %1025 = vmatprep.subr.mxu0 0.0
        %1026 = vmatpush1.xpose.msra.mxu0 0.0
        %1027 = vmatprep.subr.mxu0 0.0
        %1028 = vmatpush1.xpose.msra.mxu0 0.0
        %1029 = vmatprep.subr.mxu0 0.0
        %1030 = vmatpush1.xpose.msra.mxu0 0.0
        %1031 = vmatprep.subr.mxu0 0.0
        %1032 = vmatpush1.xpose.msra.mxu0 0.0
        %1033 = vmatprep.subr.mxu0 0.0
        %1034 = vmatpush1.xpose.msra.mxu0 0.0
        %1035 = vmatprep.subr.mxu0 0.0
        %1036 = vmatpush1.xpose.msra.mxu0 0.0
        %1037 = vmatprep.subr.mxu0 0.0
        %1038 = vmatpush1.xpose.msra.mxu0 0.0
        %1039 = vmatprep.subr.mxu0 0.0
        %1040 = vmatpush1.xpose.msra.mxu0 0.0
        %1041 = vmatprep.subr.mxu0 0.0
        %1042 = vmatpush1.xpose.msra.mxu0 0.0
        %1043 = vmatprep.subr.mxu0 0.0
        %1044 = vmatpush1.xpose.msra.mxu0 0.0
        %1045 = vmatprep.subr.mxu0 0.0
        %1046 = vmatpush1.xpose.msra.mxu0 0.0
        %1047 = vmatprep.subr.mxu0 0.0
        %1048 = vmatpush1.xpose.msra.mxu0 0.0
        %1049 = vmatprep.subr.mxu0 0.0
        %1050 = vmatpush1.xpose.msra.mxu0 0.0
        %1051 = vmatprep.subr.mxu0 0.0
        %1052 = vmatpush1.xpose.msra.mxu0 0.0
        %1053 = vmatprep.subr.mxu0 0.0
        %1054 = vmatpush1.xpose.msra.mxu0 0.0
        %1055 = vmatprep.subr.mxu0 0.0
        %1056 = vmatpush1.xpose.msra.mxu0 0.0
        %1057 = vmatprep.subr.mxu0 0.0
        %1058 = vmatpush1.xpose.msra.mxu0 0.0
        %1059 = vmatprep.subr.mxu0 0.0
        %1060 = vmatpush1.xpose.msra.mxu0 0.0
        %1061 = vmatprep.subr.mxu0 0.0
        %1062 = vmatpush1.xpose.msra.mxu0 0.0
        %1063 = vmatprep.subr.mxu0 0.0
        %1064 = vmatpush1.xpose.msra.mxu0 0.0
        %1065 = vmatprep.subr.mxu0 0.0
        %1066 = vmatpush1.xpose.msra.mxu0 0.0
        %1067 = vmatprep.subr.mxu0 0.0
        %1068 = vmatpush1.xpose.msra.mxu0 0.0
        %1069 = vmatprep.subr.mxu0 0.0
        %1070 = vmatpush1.xpose.msra.mxu0 0.0
        %1071 = vmatprep.mubr.f32.mxu0 0.0
        %1072 = vmatmul.mubr.f32.gmra.mrb[0].mxu0 %v999
        %v1073 = vpop.f32.mrb[0].mxu0
        %v1074 = vadd.f32 0.0, %v1073
        %v1075 = vpop.f32.mrb[0].mxu0
        %1076 = vmatprep.mubr.f32.mxu0 0.0
        %1077 = vmatmul.mubr.f32.gmra.mrb[0].mxu0 %v1001
        %v1078 = vpop.f32.mrb[0].mxu0
        %v1079 = vadd.f32 0.0, %v1078
        %v1080 = vpop.f32.mrb[0].mxu0
        %1081 = vdwg.mxu0
        %v1082 = vsel %vm652, %v1074, -inf
        %1083 = vmax.xlane.f32.xlu0 %v1082
        %v1084 = vpop.xlane.xlu0 %1083
        %v1085 = vsel %vm652, %v1079, -inf
        %1086 = vmax.xlane.f32.xlu0 %v1085
        %v1087 = vpop.xlane.xlu0 %1086
        %v1088 = vsub.f32 %v1074, %v1084
        %v1089 = vsub.f32 %v1079, %v1087
        %v1090 = vmul.f32 %v1088, 1.442695
        %v1091 = vpow.pop %v1090
        %v1092 = vmul.f32 %v1089, 1.442695
        %v1093 = vpow.pop %v1092
        %v1094 = vsel %vm652, %v1091, 0.0
        %1095 = vadd.xlane.f32.xlu0 %v1094
        %v1096 = vpop.xlane.xlu0 %1095
        %v1097 = vsel %vm652, %v1093, 0.0
        %1098 = vadd.xlane.f32.xlu0 %v1097
        %v1099 = vpop.xlane.xlu0 %1098
        %1100 = vrot.lane.b32.xlu0 %v985, 88
        %v1101 = vpop.permute.xlu0 %1100
        %1102 = vrot.lane.b32.xlu0 %v986, 88
        %v1103 = vpop.permute.xlu0 %1102
        %v1107 = vsel %vm652, %v1091, 0
        %v1110 = vsel %vm652, %v1093, 0
        %1112 = vmatprep.subr.mxu0 0.0
        %1113 = vmatpush1.msra.mxu0 %v1101
        %1114 = vmatprep.subr.mxu0 0.0
        %1115 = vmatpush1.msra.mxu0 %v1103
        %1116 = vmatprep.subr.mxu0 0.0
        %1117 = vmatpush1.msra.mxu0 0.0
        %1118 = vmatprep.subr.mxu0 0.0
        %1119 = vmatpush1.msra.mxu0 0.0
        %1120 = vmatprep.subr.mxu0 0.0
        %1121 = vmatpush1.msra.mxu0 0.0
        %1122 = vmatprep.subr.mxu0 0.0
        %1123 = vmatpush1.msra.mxu0 0.0
        %1124 = vmatprep.subr.mxu0 0.0
        %1125 = vmatpush1.msra.mxu0 0.0
        %1126 = vmatprep.subr.mxu0 0.0
        %1127 = vmatpush1.msra.mxu0 0.0
        %1128 = vmatprep.subr.mxu0 0.0
        %1129 = vmatpush1.msra.mxu0 0.0
        %1130 = vmatprep.subr.mxu0 0.0
        %1131 = vmatpush1.msra.mxu0 0.0
        %1132 = vmatprep.subr.mxu0 0.0
        %1133 = vmatpush1.msra.mxu0 0.0
        %1134 = vmatprep.subr.mxu0 0.0
        %1135 = vmatpush1.msra.mxu0 0.0
        %1136 = vmatprep.subr.mxu0 0.0
        %1137 = vmatpush1.msra.mxu0 0.0
        %1138 = vmatprep.subr.mxu0 0.0
        %1139 = vmatpush1.msra.mxu0 0.0
        %1140 = vmatprep.subr.mxu0 0.0
        %1141 = vmatpush1.msra.mxu0 0.0
        %1142 = vmatprep.subr.mxu0 0.0
        %1143 = vmatpush1.msra.mxu0 0.0
        %1144 = vmatprep.subr.mxu0 0.0
        %1145 = vmatpush1.msra.mxu0 0.0
        %1146 = vmatprep.subr.mxu0 0.0
        %1147 = vmatpush1.msra.mxu0 0.0
        %1148 = vmatprep.subr.mxu0 0.0
        %1149 = vmatpush1.msra.mxu0 0.0
        %1150 = vmatprep.subr.mxu0 0.0
        %1151 = vmatpush1.msra.mxu0 0.0
        %1152 = vmatprep.subr.mxu0 0.0
        %1153 = vmatpush1.msra.mxu0 0.0
        %1154 = vmatprep.subr.mxu0 0.0
        %1155 = vmatpush1.msra.mxu0 0.0
        %1156 = vmatprep.subr.mxu0 0.0
        %1157 = vmatpush1.msra.mxu0 0.0
        %1158 = vmatprep.subr.mxu0 0.0
        %1159 = vmatpush1.msra.mxu0 0.0
        %1160 = vmatprep.subr.mxu0 0.0
        %1161 = vmatpush1.msra.mxu0 0.0
        %1162 = vmatprep.subr.mxu0 0.0
        %1163 = vmatpush1.msra.mxu0 0.0
        %1164 = vmatprep.subr.mxu0 0.0
        %1165 = vmatpush1.msra.mxu0 0.0
        %1166 = vmatprep.subr.mxu0 0.0
        %1167 = vmatpush1.msra.mxu0 0.0
        %1168 = vmatprep.subr.mxu0 0.0
        %1169 = vmatpush1.msra.mxu0 0.0
        %1170 = vmatprep.subr.mxu0 0.0
        %1171 = vmatpush1.msra.mxu0 0.0
        %1172 = vmatprep.subr.mxu0 0.0
        %1173 = vmatpush1.msra.mxu0 0.0
        %1174 = vmatprep.subr.mxu0 0.0
        %1175 = vmatpush1.msra.mxu0 0.0
        %1176 = vmatprep.mubr.f32.mxu0 0.0
        %1177 = vmatmul.mubr.f32.gmra.mrb[0].mxu0 %v1107
        %v1178 = vpop.f32.mrb[0].mxu0
        %v1179 = vadd.f32 0.0, %v1178
        %v1180 = vpop.f32.mrb[0].mxu0
        %1181 = vmatprep.mubr.f32.mxu0 0.0
        %1182 = vmatmul.mubr.f32.gmra.mrb[0].mxu0 %v1110
        %v1183 = vpop.f32.mrb[0].mxu0
        %v1184 = vadd.f32 0.0, %v1183
        %v1185 = vpop.f32.mrb[0].mxu0
        %1186 = vdwg.mxu0
        %v1187 = vrcp.pop %v1096
        %v1188 = vrcp.pop %v1099
        %v1189 = vmul.f32 %v1179, %v1187
        %v1190 = vmul.f32 %v1184, %v1188
        %1193 = vrot.lane.b32.xlu0 %v1189, 8
        %v1194 = vpop.permute.xlu0 %1193
        %1195 = vrot.lane.b32.xlu0 %v1190, 8
        %v1196 = vpop.permute.xlu0 %1195
        %vm1199 = vcmask 97344
        %1200 = vst.msk [vmem:[#allocation4] sm:$0xff] %vm1199, %v1194
        %1201 = vst.msk [vmem:[#allocation4 + $0x8] sm:$0xff] %vm1199, %v1196
        %v1202 = vld [vmem:[#allocation3] sm:$0xff]
        %v1203 = vld [vmem:[#allocation3 + $0x8] sm:$0xff]
        %v1204 = vld [vmem:[#allocation2] sm:$0xff]
        %v1205 = vld [vmem:[#allocation2 + $0x8] sm:$0xff]
        %1208 = vrot.lane.b32.xlu0 %v1202, 116
        %v1209 = vpop.permute.xlu0 %1208
        %1210 = vrot.lane.b32.xlu0 %v1203, 116
        %v1211 = vpop.permute.xlu0 %1210
        %1214 = vrot.lane.b32.xlu0 %v1204, 116
        %v1215 = vpop.permute.xlu0 %1214
        %1216 = vrot.lane.b32.xlu0 %v1205, 116
        %v1217 = vpop.permute.xlu0 %1216
        %v1218 = vsel %vm564, %v1209, 0
        %v1220 = vsel %vm564, %v1211, 0
        %v1222 = vsel %vm564, %v1215, 0
        %v1224 = vsel %vm564, %v1217, 0
        %1226 = vmatprep.subr.mxu0 0.0
        %1227 = vmatpush1.xpose.msra.mxu0 %v1222
        %1228 = vmatprep.subr.mxu0 0.0
        %1229 = vmatpush1.xpose.msra.mxu0 %v1224
        %1230 = vmatprep.subr.mxu0 0.0
        %1231 = vmatpush1.xpose.msra.mxu0 0.0
        %1232 = vmatprep.subr.mxu0 0.0
        %1233 = vmatpush1.xpose.msra.mxu0 0.0
        %1234 = vmatprep.subr.mxu0 0.0
        %1235 = vmatpush1.xpose.msra.mxu0 0.0
        %1236 = vmatprep.subr.mxu0 0.0
        %1237 = vmatpush1.xpose.msra.mxu0 0.0
        %1238 = vmatprep.subr.mxu0 0.0
        %1239 = vmatpush1.xpose.msra.mxu0 0.0
        %1240 = vmatprep.subr.mxu0 0.0
        %1241 = vmatpush1.xpose.msra.mxu0 0.0
        %1242 = vmatprep.subr.mxu0 0.0
        %1243 = vmatpush1.xpose.msra.mxu0 0.0
        %1244 = vmatprep.subr.mxu0 0.0
        %1245 = vmatpush1.xpose.msra.mxu0 0.0
        %1246 = vmatprep.subr.mxu0 0.0
        %1247 = vmatpush1.xpose.msra.mxu0 0.0
        %1248 = vmatprep.subr.mxu0 0.0
        %1249 = vmatpush1.xpose.msra.mxu0 0.0
        %1250 = vmatprep.subr.mxu0 0.0
        %1251 = vmatpush1.xpose.msra.mxu0 0.0
        %1252 = vmatprep.subr.mxu0 0.0
        %1253 = vmatpush1.xpose.msra.mxu0 0.0
        %1254 = vmatprep.subr.mxu0 0.0
        %1255 = vmatpush1.xpose.msra.mxu0 0.0
        %1256 = vmatprep.subr.mxu0 0.0
        %1257 = vmatpush1.xpose.msra.mxu0 0.0
        %1258 = vmatprep.subr.mxu0 0.0
        %1259 = vmatpush1.xpose.msra.mxu0 0.0
        %1260 = vmatprep.subr.mxu0 0.0
        %1261 = vmatpush1.xpose.msra.mxu0 0.0
        %1262 = vmatprep.subr.mxu0 0.0
        %1263 = vmatpush1.xpose.msra.mxu0 0.0
        %1264 = vmatprep.subr.mxu0 0.0
        %1265 = vmatpush1.xpose.msra.mxu0 0.0
        %1266 = vmatprep.subr.mxu0 0.0
        %1267 = vmatpush1.xpose.msra.mxu0 0.0
        %1268 = vmatprep.subr.mxu0 0.0
        %1269 = vmatpush1.xpose.msra.mxu0 0.0
        %1270 = vmatprep.subr.mxu0 0.0
        %1271 = vmatpush1.xpose.msra.mxu0 0.0
        %1272 = vmatprep.subr.mxu0 0.0
        %1273 = vmatpush1.xpose.msra.mxu0 0.0
        %1274 = vmatprep.subr.mxu0 0.0
        %1275 = vmatpush1.xpose.msra.mxu0 0.0
        %1276 = vmatprep.subr.mxu0 0.0
        %1277 = vmatpush1.xpose.msra.mxu0 0.0
        %1278 = vmatprep.subr.mxu0 0.0
        %1279 = vmatpush1.xpose.msra.mxu0 0.0
        %1280 = vmatprep.subr.mxu0 0.0
        %1281 = vmatpush1.xpose.msra.mxu0 0.0
        %1282 = vmatprep.subr.mxu0 0.0
        %1283 = vmatpush1.xpose.msra.mxu0 0.0
        %1284 = vmatprep.subr.mxu0 0.0
        %1285 = vmatpush1.xpose.msra.mxu0 0.0
        %1286 = vmatprep.subr.mxu0 0.0
        %1287 = vmatpush1.xpose.msra.mxu0 0.0
        %1288 = vmatprep.subr.mxu0 0.0
        %1289 = vmatpush1.xpose.msra.mxu0 0.0
        %1290 = vmatprep.mubr.f32.mxu0 0.0
        %1291 = vmatmul.mubr.f32.gmra.mrb[0].mxu0 %v1218
        %v1292 = vpop.f32.mrb[0].mxu0
        %v1293 = vadd.f32 0.0, %v1292
        %v1294 = vpop.f32.mrb[0].mxu0
        %1295 = vmatprep.mubr.f32.mxu0 0.0
        %1296 = vmatmul.mubr.f32.gmra.mrb[0].mxu0 %v1220
        %v1297 = vpop.f32.mrb[0].mxu0
        %v1298 = vadd.f32 0.0, %v1297
        %v1299 = vpop.f32.mrb[0].mxu0
        %1300 = vdwg.mxu0
        %v1301 = vsel %vm652, %v1293, -inf
        %1302 = vmax.xlane.f32.xlu0 %v1301
        %v1303 = vpop.xlane.xlu0 %1302
        %v1304 = vsel %vm652, %v1298, -inf
        %1305 = vmax.xlane.f32.xlu0 %v1304
        %v1306 = vpop.xlane.xlu0 %1305
        %v1307 = vsub.f32 %v1293, %v1303
        %v1308 = vsub.f32 %v1298, %v1306
        %v1309 = vmul.f32 %v1307, 1.442695
        %v1310 = vpow.pop %v1309
        %v1311 = vmul.f32 %v1308, 1.442695
        %v1312 = vpow.pop %v1311
        %v1313 = vsel %vm652, %v1310, 0.0
        %1314 = vadd.xlane.f32.xlu0 %v1313
        %v1315 = vpop.xlane.xlu0 %1314
        %v1316 = vsel %vm652, %v1312, 0.0
        %1317 = vadd.xlane.f32.xlu0 %v1316
        %v1318 = vpop.xlane.xlu0 %1317
        %1319 = vrot.lane.b32.xlu0 %v1204, 84
        %v1320 = vpop.permute.xlu0 %1319
        %1321 = vrot.lane.b32.xlu0 %v1205, 84
        %v1322 = vpop.permute.xlu0 %1321
        %v1326 = vsel %vm652, %v1310, 0
        %v1329 = vsel %vm652, %v1312, 0
        %1331 = vmatprep.subr.mxu0 0.0
        %1332 = vmatpush1.msra.mxu0 %v1320
        %1333 = vmatprep.subr.mxu0 0.0
        %1334 = vmatpush1.msra.mxu0 %v1322
        %1335 = vmatprep.subr.mxu0 0.0
        %1336 = vmatpush1.msra.mxu0 0.0
        %1337 = vmatprep.subr.mxu0 0.0
        %1338 = vmatpush1.msra.mxu0 0.0
        %1339 = vmatprep.subr.mxu0 0.0
        %1340 = vmatpush1.msra.mxu0 0.0
        %1341 = vmatprep.subr.mxu0 0.0
        %1342 = vmatpush1.msra.mxu0 0.0
        %1343 = vmatprep.subr.mxu0 0.0
        %1344 = vmatpush1.msra.mxu0 0.0
        %1345 = vmatprep.subr.mxu0 0.0
        %1346 = vmatpush1.msra.mxu0 0.0
        %1347 = vmatprep.subr.mxu0 0.0
        %1348 = vmatpush1.msra.mxu0 0.0
        %1349 = vmatprep.subr.mxu0 0.0
        %1350 = vmatpush1.msra.mxu0 0.0
        %1351 = vmatprep.subr.mxu0 0.0
        %1352 = vmatpush1.msra.mxu0 0.0
        %1353 = vmatprep.subr.mxu0 0.0
        %1354 = vmatpush1.msra.mxu0 0.0
        %1355 = vmatprep.subr.mxu0 0.0
        %1356 = vmatpush1.msra.mxu0 0.0
        %1357 = vmatprep.subr.mxu0 0.0
        %1358 = vmatpush1.msra.mxu0 0.0
        %1359 = vmatprep.subr.mxu0 0.0
        %1360 = vmatpush1.msra.mxu0 0.0
        %1361 = vmatprep.subr.mxu0 0.0
        %1362 = vmatpush1.msra.mxu0 0.0
        %1363 = vmatprep.subr.mxu0 0.0
        %1364 = vmatpush1.msra.mxu0 0.0
        %1365 = vmatprep.subr.mxu0 0.0
        %1366 = vmatpush1.msra.mxu0 0.0
        %1367 = vmatprep.subr.mxu0 0.0
        %1368 = vmatpush1.msra.mxu0 0.0
        %1369 = vmatprep.subr.mxu0 0.0
        %1370 = vmatpush1.msra.mxu0 0.0
        %1371 = vmatprep.subr.mxu0 0.0
        %1372 = vmatpush1.msra.mxu0 0.0
        %1373 = vmatprep.subr.mxu0 0.0
        %1374 = vmatpush1.msra.mxu0 0.0
        %1375 = vmatprep.subr.mxu0 0.0
        %1376 = vmatpush1.msra.mxu0 0.0
        %1377 = vmatprep.subr.mxu0 0.0
        %1378 = vmatpush1.msra.mxu0 0.0
        %1379 = vmatprep.subr.mxu0 0.0
        %1380 = vmatpush1.msra.mxu0 0.0
        %1381 = vmatprep.subr.mxu0 0.0
        %1382 = vmatpush1.msra.mxu0 0.0
        %1383 = vmatprep.subr.mxu0 0.0
        %1384 = vmatpush1.msra.mxu0 0.0
        %1385 = vmatprep.subr.mxu0 0.0
        %1386 = vmatpush1.msra.mxu0 0.0
        %1387 = vmatprep.subr.mxu0 0.0
        %1388 = vmatpush1.msra.mxu0 0.0
        %1389 = vmatprep.subr.mxu0 0.0
        %1390 = vmatpush1.msra.mxu0 0.0
        %1391 = vmatprep.subr.mxu0 0.0
        %1392 = vmatpush1.msra.mxu0 0.0
        %1393 = vmatprep.subr.mxu0 0.0
        %1394 = vmatpush1.msra.mxu0 0.0
        %1395 = vmatprep.mubr.f32.mxu0 0.0
        %1396 = vmatmul.mubr.f32.gmra.mrb[0].mxu0 %v1326
        %v1397 = vpop.f32.mrb[0].mxu0
        %v1398 = vadd.f32 0.0, %v1397
        %v1399 = vpop.f32.mrb[0].mxu0
        %1400 = vmatprep.mubr.f32.mxu0 0.0
        %1401 = vmatmul.mubr.f32.gmra.mrb[0].mxu0 %v1329
        %v1402 = vpop.f32.mrb[0].mxu0
        %v1403 = vadd.f32 0.0, %v1402
        %v1404 = vpop.f32.mrb[0].mxu0
        %1405 = vdwg.mxu0
        %v1406 = vrcp.pop %v1315
        %v1407 = vrcp.pop %v1318
        %v1408 = vmul.f32 %v1398, %v1406
        %v1409 = vmul.f32 %v1403, %v1407
        %1412 = vrot.lane.b32.xlu0 %v1408, 12
        %v1413 = vpop.permute.xlu0 %1412
        %1414 = vrot.lane.b32.xlu0 %v1409, 12
        %v1415 = vpop.permute.xlu0 %1414
        %vm1418 = vcmask 130144
        %1419 = vst.msk [vmem:[#allocation4] sm:$0xff] %vm1418, %v1413
        %1420 = vst.msk [vmem:[#allocation4 + $0x8] sm:$0xff] %vm1418, %v1415
        %v1421 = vld [vmem:[#allocation3] sm:$0xff]
        %v1422 = vld [vmem:[#allocation3 + $0x8] sm:$0xff]
        %v1423 = vld [vmem:[#allocation2] sm:$0xff]
        %v1424 = vld [vmem:[#allocation2 + $0x8] sm:$0xff]
        %1427 = vrot.lane.b32.xlu0 %v1421, 112
        %v1428 = vpop.permute.xlu0 %1427
        %1429 = vrot.lane.b32.xlu0 %v1422, 112
        %v1430 = vpop.permute.xlu0 %1429
        %1433 = vrot.lane.b32.xlu0 %v1423, 112
        %v1434 = vpop.permute.xlu0 %1433
        %1435 = vrot.lane.b32.xlu0 %v1424, 112
        %v1436 = vpop.permute.xlu0 %1435
        %v1437 = vsel %vm564, %v1428, 0
        %v1439 = vsel %vm564, %v1430, 0
        %v1441 = vsel %vm564, %v1434, 0
        %v1443 = vsel %vm564, %v1436, 0
        %1445 = vmatprep.subr.mxu0 0.0
        %1446 = vmatpush1.xpose.msra.mxu0 %v1441
        %1447 = vmatprep.subr.mxu0 0.0
        %1448 = vmatpush1.xpose.msra.mxu0 %v1443
        %1449 = vmatprep.subr.mxu0 0.0
        %1450 = vmatpush1.xpose.msra.mxu0 0.0
        %1451 = vmatprep.subr.mxu0 0.0
        %1452 = vmatpush1.xpose.msra.mxu0 0.0
        %1453 = vmatprep.subr.mxu0 0.0
        %1454 = vmatpush1.xpose.msra.mxu0 0.0
        %1455 = vmatprep.subr.mxu0 0.0
        %1456 = vmatpush1.xpose.msra.mxu0 0.0
        %1457 = vmatprep.subr.mxu0 0.0
        %1458 = vmatpush1.xpose.msra.mxu0 0.0
        %1459 = vmatprep.subr.mxu0 0.0
        %1460 = vmatpush1.xpose.msra.mxu0 0.0
        %1461 = vmatprep.subr.mxu0 0.0
        %1462 = vmatpush1.xpose.msra.mxu0 0.0
        %1463 = vmatprep.subr.mxu0 0.0
        %1464 = vmatpush1.xpose.msra.mxu0 0.0
        %1465 = vmatprep.subr.mxu0 0.0
        %1466 = vmatpush1.xpose.msra.mxu0 0.0
        %1467 = vmatprep.subr.mxu0 0.0
        %1468 = vmatpush1.xpose.msra.mxu0 0.0
        %1469 = vmatprep.subr.mxu0 0.0
        %1470 = vmatpush1.xpose.msra.mxu0 0.0
        %1471 = vmatprep.subr.mxu0 0.0
        %1472 = vmatpush1.xpose.msra.mxu0 0.0
        %1473 = vmatprep.subr.mxu0 0.0
        %1474 = vmatpush1.xpose.msra.mxu0 0.0
        %1475 = vmatprep.subr.mxu0 0.0
        %1476 = vmatpush1.xpose.msra.mxu0 0.0
        %1477 = vmatprep.subr.mxu0 0.0
        %1478 = vmatpush1.xpose.msra.mxu0 0.0
        %1479 = vmatprep.subr.mxu0 0.0
        %1480 = vmatpush1.xpose.msra.mxu0 0.0
        %1481 = vmatprep.subr.mxu0 0.0
        %1482 = vmatpush1.xpose.msra.mxu0 0.0
        %1483 = vmatprep.subr.mxu0 0.0
        %1484 = vmatpush1.xpose.msra.mxu0 0.0
        %1485 = vmatprep.subr.mxu0 0.0
        %1486 = vmatpush1.xpose.msra.mxu0 0.0
        %1487 = vmatprep.subr.mxu0 0.0
        %1488 = vmatpush1.xpose.msra.mxu0 0.0
        %1489 = vmatprep.subr.mxu0 0.0
        %1490 = vmatpush1.xpose.msra.mxu0 0.0
        %1491 = vmatprep.subr.mxu0 0.0
        %1492 = vmatpush1.xpose.msra.mxu0 0.0
        %1493 = vmatprep.subr.mxu0 0.0
        %1494 = vmatpush1.xpose.msra.mxu0 0.0
        %1495 = vmatprep.subr.mxu0 0.0
        %1496 = vmatpush1.xpose.msra.mxu0 0.0
        %1497 = vmatprep.subr.mxu0 0.0
        %1498 = vmatpush1.xpose.msra.mxu0 0.0
        %1499 = vmatprep.subr.mxu0 0.0
        %1500 = vmatpush1.xpose.msra.mxu0 0.0
        %1501 = vmatprep.subr.mxu0 0.0
        %1502 = vmatpush1.xpose.msra.mxu0 0.0
        %1503 = vmatprep.subr.mxu0 0.0
        %1504 = vmatpush1.xpose.msra.mxu0 0.0
        %1505 = vmatprep.subr.mxu0 0.0
        %1506 = vmatpush1.xpose.msra.mxu0 0.0
        %1507 = vmatprep.subr.mxu0 0.0
        %1508 = vmatpush1.xpose.msra.mxu0 0.0
        %1509 = vmatprep.mubr.f32.mxu0 0.0
        %1510 = vmatmul.mubr.f32.gmra.mrb[0].mxu0 %v1437
        %v1511 = vpop.f32.mrb[0].mxu0
        %v1512 = vadd.f32 0.0, %v1511
        %v1513 = vpop.f32.mrb[0].mxu0
        %1514 = vmatprep.mubr.f32.mxu0 0.0
        %1515 = vmatmul.mubr.f32.gmra.mrb[0].mxu0 %v1439
        %v1516 = vpop.f32.mrb[0].mxu0
        %v1517 = vadd.f32 0.0, %v1516
        %v1518 = vpop.f32.mrb[0].mxu0
        %1519 = vdwg.mxu0
        %v1520 = vsel %vm652, %v1512, -inf
        %1521 = vmax.xlane.f32.xlu0 %v1520
        %v1522 = vpop.xlane.xlu0 %1521
        %v1523 = vsel %vm652, %v1517, -inf
        %1524 = vmax.xlane.f32.xlu0 %v1523
        %v1525 = vpop.xlane.xlu0 %1524
        %v1526 = vsub.f32 %v1512, %v1522
        %v1527 = vsub.f32 %v1517, %v1525
        %v1528 = vmul.f32 %v1526, 1.442695
        %v1529 = vpow.pop %v1528
        %v1530 = vmul.f32 %v1527, 1.442695
        %v1531 = vpow.pop %v1530
        %v1532 = vsel %vm652, %v1529, 0.0
        %1533 = vadd.xlane.f32.xlu0 %v1532
        %v1534 = vpop.xlane.xlu0 %1533
        %v1535 = vsel %vm652, %v1531, 0.0
        %1536 = vadd.xlane.f32.xlu0 %v1535
        %v1537 = vpop.xlane.xlu0 %1536
        %1538 = vrot.lane.b32.xlu0 %v1423, 80
        %v1539 = vpop.permute.xlu0 %1538
        %1540 = vrot.lane.b32.xlu0 %v1424, 80
        %v1541 = vpop.permute.xlu0 %1540
        %v1545 = vsel %vm652, %v1529, 0
        %v1548 = vsel %vm652, %v1531, 0
        %1550 = vmatprep.subr.mxu0 0.0
        %1551 = vmatpush1.msra.mxu0 %v1539
        %1552 = vmatprep.subr.mxu0 0.0
        %1553 = vmatpush1.msra.mxu0 %v1541
        %1554 = vmatprep.subr.mxu0 0.0
        %1555 = vmatpush1.msra.mxu0 0.0
        %1556 = vmatprep.subr.mxu0 0.0
        %1557 = vmatpush1.msra.mxu0 0.0
        %1558 = vmatprep.subr.mxu0 0.0
        %1559 = vmatpush1.msra.mxu0 0.0
        %1560 = vmatprep.subr.mxu0 0.0
        %1561 = vmatpush1.msra.mxu0 0.0
        %1562 = vmatprep.subr.mxu0 0.0
        %1563 = vmatpush1.msra.mxu0 0.0
        %1564 = vmatprep.subr.mxu0 0.0
        %1565 = vmatpush1.msra.mxu0 0.0
        %1566 = vmatprep.subr.mxu0 0.0
        %1567 = vmatpush1.msra.mxu0 0.0
        %1568 = vmatprep.subr.mxu0 0.0
        %1569 = vmatpush1.msra.mxu0 0.0
        %1570 = vmatprep.subr.mxu0 0.0
        %1571 = vmatpush1.msra.mxu0 0.0
        %1572 = vmatprep.subr.mxu0 0.0
        %1573 = vmatpush1.msra.mxu0 0.0
        %1574 = vmatprep.subr.mxu0 0.0
        %1575 = vmatpush1.msra.mxu0 0.0
        %1576 = vmatprep.subr.mxu0 0.0
        %1577 = vmatpush1.msra.mxu0 0.0
        %1578 = vmatprep.subr.mxu0 0.0
        %1579 = vmatpush1.msra.mxu0 0.0
        %1580 = vmatprep.subr.mxu0 0.0
        %1581 = vmatpush1.msra.mxu0 0.0
        %1582 = vmatprep.subr.mxu0 0.0
        %1583 = vmatpush1.msra.mxu0 0.0
        %1584 = vmatprep.subr.mxu0 0.0
        %1585 = vmatpush1.msra.mxu0 0.0
        %1586 = vmatprep.subr.mxu0 0.0
        %1587 = vmatpush1.msra.mxu0 0.0
        %1588 = vmatprep.subr.mxu0 0.0
        %1589 = vmatpush1.msra.mxu0 0.0
        %1590 = vmatprep.subr.mxu0 0.0
        %1591 = vmatpush1.msra.mxu0 0.0
        %1592 = vmatprep.subr.mxu0 0.0
        %1593 = vmatpush1.msra.mxu0 0.0
        %1594 = vmatprep.subr.mxu0 0.0
        %1595 = vmatpush1.msra.mxu0 0.0
        %1596 = vmatprep.subr.mxu0 0.0
        %1597 = vmatpush1.msra.mxu0 0.0
        %1598 = vmatprep.subr.mxu0 0.0
        %1599 = vmatpush1.msra.mxu0 0.0
        %1600 = vmatprep.subr.mxu0 0.0
        %1601 = vmatpush1.msra.mxu0 0.0
        %1602 = vmatprep.subr.mxu0 0.0
        %1603 = vmatpush1.msra.mxu0 0.0
        %1604 = vmatprep.subr.mxu0 0.0
        %1605 = vmatpush1.msra.mxu0 0.0
        %1606 = vmatprep.subr.mxu0 0.0
        %1607 = vmatpush1.msra.mxu0 0.0
        %1608 = vmatprep.subr.mxu0 0.0
        %1609 = vmatpush1.msra.mxu0 0.0
        %1610 = vmatprep.subr.mxu0 0.0
        %1611 = vmatpush1.msra.mxu0 0.0
        %1612 = vmatprep.subr.mxu0 0.0
        %1613 = vmatpush1.msra.mxu0 0.0
        %1614 = vmatprep.mubr.f32.mxu0 0.0
        %1615 = vmatmul.mubr.f32.gmra.mrb[0].mxu0 %v1545
        %v1616 = vpop.f32.mrb[0].mxu0
        %v1617 = vadd.f32 0.0, %v1616
        %v1618 = vpop.f32.mrb[0].mxu0
        %1619 = vmatprep.mubr.f32.mxu0 0.0
        %1620 = vmatmul.mubr.f32.gmra.mrb[0].mxu0 %v1548
        %v1621 = vpop.f32.mrb[0].mxu0
        %v1622 = vadd.f32 0.0, %v1621
        %v1623 = vpop.f32.mrb[0].mxu0
        %1624 = vdwg.mxu0
        %v1625 = vrcp.pop %v1534
        %v1626 = vrcp.pop %v1537
        %v1627 = vmul.f32 %v1617, %v1625
        %v1628 = vmul.f32 %v1622, %v1626
        %1631 = vrot.lane.b32.xlu0 %v1627, 16
        %v1632 = vpop.permute.xlu0 %1631
        %1633 = vrot.lane.b32.xlu0 %v1628, 16
        %v1634 = vpop.permute.xlu0 %1633
        %vm1637 = vcmask 162944
        %1638 = vst.msk [vmem:[#allocation4] sm:$0xff] %vm1637, %v1632
        %1639 = vst.msk [vmem:[#allocation4 + $0x8] sm:$0xff] %vm1637, %v1634
        %v1640 = vld [vmem:[#allocation3] sm:$0xff]
        %v1641 = vld [vmem:[#allocation3 + $0x8] sm:$0xff]
        %v1642 = vld [vmem:[#allocation2] sm:$0xff]
        %v1643 = vld [vmem:[#allocation2 + $0x8] sm:$0xff]
        %1646 = vrot.lane.b32.xlu0 %v1640, 108
        %v1647 = vpop.permute.xlu0 %1646
        %1648 = vrot.lane.b32.xlu0 %v1641, 108
        %v1649 = vpop.permute.xlu0 %1648
        %1652 = vrot.lane.b32.xlu0 %v1642, 108
        %v1653 = vpop.permute.xlu0 %1652
        %1654 = vrot.lane.b32.xlu0 %v1643, 108
        %v1655 = vpop.permute.xlu0 %1654
        %v1656 = vsel %vm564, %v1647, 0
        %v1658 = vsel %vm564, %v1649, 0
        %v1660 = vsel %vm564, %v1653, 0
        %v1662 = vsel %vm564, %v1655, 0
        %1664 = vmatprep.subr.mxu0 0.0
        %1665 = vmatpush1.xpose.msra.mxu0 %v1660
        %1666 = vmatprep.subr.mxu0 0.0
        %1667 = vmatpush1.xpose.msra.mxu0 %v1662
        %1668 = vmatprep.subr.mxu0 0.0
        %1669 = vmatpush1.xpose.msra.mxu0 0.0
        %1670 = vmatprep.subr.mxu0 0.0
        %1671 = vmatpush1.xpose.msra.mxu0 0.0
        %1672 = vmatprep.subr.mxu0 0.0
        %1673 = vmatpush1.xpose.msra.mxu0 0.0
        %1674 = vmatprep.subr.mxu0 0.0
        %1675 = vmatpush1.xpose.msra.mxu0 0.0
        %1676 = vmatprep.subr.mxu0 0.0
        %1677 = vmatpush1.xpose.msra.mxu0 0.0
        %1678 = vmatprep.subr.mxu0 0.0
        %1679 = vmatpush1.xpose.msra.mxu0 0.0
        %1680 = vmatprep.subr.mxu0 0.0
        %1681 = vmatpush1.xpose.msra.mxu0 0.0
        %1682 = vmatprep.subr.mxu0 0.0
        %1683 = vmatpush1.xpose.msra.mxu0 0.0
        %1684 = vmatprep.subr.mxu0 0.0
        %1685 = vmatpush1.xpose.msra.mxu0 0.0
        %1686 = vmatprep.subr.mxu0 0.0
        %1687 = vmatpush1.xpose.msra.mxu0 0.0
        %1688 = vmatprep.subr.mxu0 0.0
        %1689 = vmatpush1.xpose.msra.mxu0 0.0
        %1690 = vmatprep.subr.mxu0 0.0
        %1691 = vmatpush1.xpose.msra.mxu0 0.0
        %1692 = vmatprep.subr.mxu0 0.0
        %1693 = vmatpush1.xpose.msra.mxu0 0.0
        %1694 = vmatprep.subr.mxu0 0.0
        %1695 = vmatpush1.xpose.msra.mxu0 0.0
        %1696 = vmatprep.subr.mxu0 0.0
        %1697 = vmatpush1.xpose.msra.mxu0 0.0
        %1698 = vmatprep.subr.mxu0 0.0
        %1699 = vmatpush1.xpose.msra.mxu0 0.0
        %1700 = vmatprep.subr.mxu0 0.0
        %1701 = vmatpush1.xpose.msra.mxu0 0.0
        %1702 = vmatprep.subr.mxu0 0.0
        %1703 = vmatpush1.xpose.msra.mxu0 0.0
        %1704 = vmatprep.subr.mxu0 0.0
        %1705 = vmatpush1.xpose.msra.mxu0 0.0
        %1706 = vmatprep.subr.mxu0 0.0
        %1707 = vmatpush1.xpose.msra.mxu0 0.0
        %1708 = vmatprep.subr.mxu0 0.0
        %1709 = vmatpush1.xpose.msra.mxu0 0.0
        %1710 = vmatprep.subr.mxu0 0.0
        %1711 = vmatpush1.xpose.msra.mxu0 0.0
        %1712 = vmatprep.subr.mxu0 0.0
        %1713 = vmatpush1.xpose.msra.mxu0 0.0
        %1714 = vmatprep.subr.mxu0 0.0
        %1715 = vmatpush1.xpose.msra.mxu0 0.0
        %1716 = vmatprep.subr.mxu0 0.0
        %1717 = vmatpush1.xpose.msra.mxu0 0.0
        %1718 = vmatprep.subr.mxu0 0.0
        %1719 = vmatpush1.xpose.msra.mxu0 0.0
        %1720 = vmatprep.subr.mxu0 0.0
        %1721 = vmatpush1.xpose.msra.mxu0 0.0
        %1722 = vmatprep.subr.mxu0 0.0
        %1723 = vmatpush1.xpose.msra.mxu0 0.0
        %1724 = vmatprep.subr.mxu0 0.0
        %1725 = vmatpush1.xpose.msra.mxu0 0.0
        %1726 = vmatprep.subr.mxu0 0.0
        %1727 = vmatpush1.xpose.msra.mxu0 0.0
        %1728 = vmatprep.mubr.f32.mxu0 0.0
        %1729 = vmatmul.mubr.f32.gmra.mrb[0].mxu0 %v1656
        %v1730 = vpop.f32.mrb[0].mxu0
        %v1731 = vadd.f32 0.0, %v1730
        %v1732 = vpop.f32.mrb[0].mxu0
        %1733 = vmatprep.mubr.f32.mxu0 0.0
        %1734 = vmatmul.mubr.f32.gmra.mrb[0].mxu0 %v1658
        %v1735 = vpop.f32.mrb[0].mxu0
        %v1736 = vadd.f32 0.0, %v1735
        %v1737 = vpop.f32.mrb[0].mxu0
        %1738 = vdwg.mxu0
        %v1739 = vsel %vm652, %v1731, -inf
        %1740 = vmax.xlane.f32.xlu0 %v1739
        %v1741 = vpop.xlane.xlu0 %1740
        %v1742 = vsel %vm652, %v1736, -inf
        %1743 = vmax.xlane.f32.xlu0 %v1742
        %v1744 = vpop.xlane.xlu0 %1743
        %v1745 = vsub.f32 %v1731, %v1741
        %v1746 = vsub.f32 %v1736, %v1744
        %v1747 = vmul.f32 %v1745, 1.442695
        %v1748 = vpow.pop %v1747
        %v1749 = vmul.f32 %v1746, 1.442695
        %v1750 = vpow.pop %v1749
        %v1751 = vsel %vm652, %v1748, 0.0
        %1752 = vadd.xlane.f32.xlu0 %v1751
        %v1753 = vpop.xlane.xlu0 %1752
        %v1754 = vsel %vm652, %v1750, 0.0
        %1755 = vadd.xlane.f32.xlu0 %v1754
        %v1756 = vpop.xlane.xlu0 %1755
        %1757 = vrot.lane.b32.xlu0 %v1642, 76
        %v1758 = vpop.permute.xlu0 %1757
        %1759 = vrot.lane.b32.xlu0 %v1643, 76
        %v1760 = vpop.permute.xlu0 %1759
        %v1764 = vsel %vm652, %v1748, 0
        %v1767 = vsel %vm652, %v1750, 0
        %1769 = vmatprep.subr.mxu0 0.0
        %1770 = vmatpush1.msra.mxu0 %v1758
        %1771 = vmatprep.subr.mxu0 0.0
        %1772 = vmatpush1.msra.mxu0 %v1760
        %1773 = vmatprep.subr.mxu0 0.0
        %1774 = vmatpush1.msra.mxu0 0.0
        %1775 = vmatprep.subr.mxu0 0.0
        %1776 = vmatpush1.msra.mxu0 0.0
        %1777 = vmatprep.subr.mxu0 0.0
        %1778 = vmatpush1.msra.mxu0 0.0
        %1779 = vmatprep.subr.mxu0 0.0
        %1780 = vmatpush1.msra.mxu0 0.0
        %1781 = vmatprep.subr.mxu0 0.0
        %1782 = vmatpush1.msra.mxu0 0.0
        %1783 = vmatprep.subr.mxu0 0.0
        %1784 = vmatpush1.msra.mxu0 0.0
        %1785 = vmatprep.subr.mxu0 0.0
        %1786 = vmatpush1.msra.mxu0 0.0
        %1787 = vmatprep.subr.mxu0 0.0
        %1788 = vmatpush1.msra.mxu0 0.0
        %1789 = vmatprep.subr.mxu0 0.0
        %1790 = vmatpush1.msra.mxu0 0.0
        %1791 = vmatprep.subr.mxu0 0.0
        %1792 = vmatpush1.msra.mxu0 0.0
        %1793 = vmatprep.subr.mxu0 0.0
        %1794 = vmatpush1.msra.mxu0 0.0
        %1795 = vmatprep.subr.mxu0 0.0
        %1796 = vmatpush1.msra.mxu0 0.0
        %1797 = vmatprep.subr.mxu0 0.0
        %1798 = vmatpush1.msra.mxu0 0.0
        %1799 = vmatprep.subr.mxu0 0.0
        %1800 = vmatpush1.msra.mxu0 0.0
        %1801 = vmatprep.subr.mxu0 0.0
        %1802 = vmatpush1.msra.mxu0 0.0
        %1803 = vmatprep.subr.mxu0 0.0
        %1804 = vmatpush1.msra.mxu0 0.0
        %1805 = vmatprep.subr.mxu0 0.0
        %1806 = vmatpush1.msra.mxu0 0.0
        %1807 = vmatprep.subr.mxu0 0.0
        %1808 = vmatpush1.msra.mxu0 0.0
        %1809 = vmatprep.subr.mxu0 0.0
        %1810 = vmatpush1.msra.mxu0 0.0
        %1811 = vmatprep.subr.mxu0 0.0
        %1812 = vmatpush1.msra.mxu0 0.0
        %1813 = vmatprep.subr.mxu0 0.0
        %1814 = vmatpush1.msra.mxu0 0.0
        %1815 = vmatprep.subr.mxu0 0.0
        %1816 = vmatpush1.msra.mxu0 0.0
        %1817 = vmatprep.subr.mxu0 0.0
        %1818 = vmatpush1.msra.mxu0 0.0
        %1819 = vmatprep.subr.mxu0 0.0
        %1820 = vmatpush1.msra.mxu0 0.0
        %1821 = vmatprep.subr.mxu0 0.0
        %1822 = vmatpush1.msra.mxu0 0.0
        %1823 = vmatprep.subr.mxu0 0.0
        %1824 = vmatpush1.msra.mxu0 0.0
        %1825 = vmatprep.subr.mxu0 0.0
        %1826 = vmatpush1.msra.mxu0 0.0
        %1827 = vmatprep.subr.mxu0 0.0
        %1828 = vmatpush1.msra.mxu0 0.0
        %1829 = vmatprep.subr.mxu0 0.0
        %1830 = vmatpush1.msra.mxu0 0.0
        %1831 = vmatprep.subr.mxu0 0.0
        %1832 = vmatpush1.msra.mxu0 0.0
        %1833 = vmatprep.mubr.f32.mxu0 0.0
        %1834 = vmatmul.mubr.f32.gmra.mrb[0].mxu0 %v1764
        %v1835 = vpop.f32.mrb[0].mxu0
        %v1836 = vadd.f32 0.0, %v1835
        %v1837 = vpop.f32.mrb[0].mxu0
        %1838 = vmatprep.mubr.f32.mxu0 0.0
        %1839 = vmatmul.mubr.f32.gmra.mrb[0].mxu0 %v1767
        %v1840 = vpop.f32.mrb[0].mxu0
        %v1841 = vadd.f32 0.0, %v1840
        %v1842 = vpop.f32.mrb[0].mxu0
        %1843 = vdwg.mxu0
        %v1844 = vrcp.pop %v1753
        %v1845 = vrcp.pop %v1756
        %v1846 = vmul.f32 %v1836, %v1844
        %v1847 = vmul.f32 %v1841, %v1845
        %1850 = vrot.lane.b32.xlu0 %v1846, 20
        %v1851 = vpop.permute.xlu0 %1850
        %1852 = vrot.lane.b32.xlu0 %v1847, 20
        %v1853 = vpop.permute.xlu0 %1852
        %vm1856 = vcmask 195744
        %1857 = vst.msk [vmem:[#allocation4] sm:$0xff] %vm1856, %v1851
        %1858 = vst.msk [vmem:[#allocation4 + $0x8] sm:$0xff] %vm1856, %v1853
        %v1859 = vld [vmem:[#allocation3] sm:$0xff]
        %v1860 = vld [vmem:[#allocation3 + $0x8] sm:$0xff]
        %v1861 = vld [vmem:[#allocation2] sm:$0xff]
        %v1862 = vld [vmem:[#allocation2 + $0x8] sm:$0xff]
        %1865 = vrot.lane.b32.xlu0 %v1859, 104
        %v1866 = vpop.permute.xlu0 %1865
        %1867 = vrot.lane.b32.xlu0 %v1860, 104
        %v1868 = vpop.permute.xlu0 %1867
        %1871 = vrot.lane.b32.xlu0 %v1861, 104
        %v1872 = vpop.permute.xlu0 %1871
        %1873 = vrot.lane.b32.xlu0 %v1862, 104
        %v1874 = vpop.permute.xlu0 %1873
        %v1875 = vsel %vm564, %v1866, 0
        %v1877 = vsel %vm564, %v1868, 0
        %v1879 = vsel %vm564, %v1872, 0
        %v1881 = vsel %vm564, %v1874, 0
        %1883 = vmatprep.subr.mxu0 0.0
        %1884 = vmatpush1.xpose.msra.mxu0 %v1879
        %1885 = vmatprep.subr.mxu0 0.0
        %1886 = vmatpush1.xpose.msra.mxu0 %v1881
        %1887 = vmatprep.subr.mxu0 0.0
        %1888 = vmatpush1.xpose.msra.mxu0 0.0
        %1889 = vmatprep.subr.mxu0 0.0
        %1890 = vmatpush1.xpose.msra.mxu0 0.0
        %1891 = vmatprep.subr.mxu0 0.0
        %1892 = vmatpush1.xpose.msra.mxu0 0.0
        %1893 = vmatprep.subr.mxu0 0.0
        %1894 = vmatpush1.xpose.msra.mxu0 0.0
        %1895 = vmatprep.subr.mxu0 0.0
        %1896 = vmatpush1.xpose.msra.mxu0 0.0
        %1897 = vmatprep.subr.mxu0 0.0
        %1898 = vmatpush1.xpose.msra.mxu0 0.0
        %1899 = vmatprep.subr.mxu0 0.0
        %1900 = vmatpush1.xpose.msra.mxu0 0.0
        %1901 = vmatprep.subr.mxu0 0.0
        %1902 = vmatpush1.xpose.msra.mxu0 0.0
        %1903 = vmatprep.subr.mxu0 0.0
        %1904 = vmatpush1.xpose.msra.mxu0 0.0
        %1905 = vmatprep.subr.mxu0 0.0
        %1906 = vmatpush1.xpose.msra.mxu0 0.0
        %1907 = vmatprep.subr.mxu0 0.0
        %1908 = vmatpush1.xpose.msra.mxu0 0.0
        %1909 = vmatprep.subr.mxu0 0.0
        %1910 = vmatpush1.xpose.msra.mxu0 0.0
        %1911 = vmatprep.subr.mxu0 0.0
        %1912 = vmatpush1.xpose.msra.mxu0 0.0
        %1913 = vmatprep.subr.mxu0 0.0
        %1914 = vmatpush1.xpose.msra.mxu0 0.0
        %1915 = vmatprep.subr.mxu0 0.0
        %1916 = vmatpush1.xpose.msra.mxu0 0.0
        %1917 = vmatprep.subr.mxu0 0.0
        %1918 = vmatpush1.xpose.msra.mxu0 0.0
        %1919 = vmatprep.subr.mxu0 0.0
        %1920 = vmatpush1.xpose.msra.mxu0 0.0
        %1921 = vmatprep.subr.mxu0 0.0
        %1922 = vmatpush1.xpose.msra.mxu0 0.0
        %1923 = vmatprep.subr.mxu0 0.0
        %1924 = vmatpush1.xpose.msra.mxu0 0.0
        %1925 = vmatprep.subr.mxu0 0.0
        %1926 = vmatpush1.xpose.msra.mxu0 0.0
        %1927 = vmatprep.subr.mxu0 0.0
        %1928 = vmatpush1.xpose.msra.mxu0 0.0
        %1929 = vmatprep.subr.mxu0 0.0
        %1930 = vmatpush1.xpose.msra.mxu0 0.0
        %1931 = vmatprep.subr.mxu0 0.0
        %1932 = vmatpush1.xpose.msra.mxu0 0.0
        %1933 = vmatprep.subr.mxu0 0.0
        %1934 = vmatpush1.xpose.msra.mxu0 0.0
        %1935 = vmatprep.subr.mxu0 0.0
        %1936 = vmatpush1.xpose.msra.mxu0 0.0
        %1937 = vmatprep.subr.mxu0 0.0
        %1938 = vmatpush1.xpose.msra.mxu0 0.0
        %1939 = vmatprep.subr.mxu0 0.0
        %1940 = vmatpush1.xpose.msra.mxu0 0.0
        %1941 = vmatprep.subr.mxu0 0.0
        %1942 = vmatpush1.xpose.msra.mxu0 0.0
        %1943 = vmatprep.subr.mxu0 0.0
        %1944 = vmatpush1.xpose.msra.mxu0 0.0
        %1945 = vmatprep.subr.mxu0 0.0
        %1946 = vmatpush1.xpose.msra.mxu0 0.0
        %1947 = vmatprep.mubr.f32.mxu0 0.0
        %1948 = vmatmul.mubr.f32.gmra.mrb[0].mxu0 %v1875
        %v1949 = vpop.f32.mrb[0].mxu0
        %v1950 = vadd.f32 0.0, %v1949
        %v1951 = vpop.f32.mrb[0].mxu0
        %1952 = vmatprep.mubr.f32.mxu0 0.0
        %1953 = vmatmul.mubr.f32.gmra.mrb[0].mxu0 %v1877
        %v1954 = vpop.f32.mrb[0].mxu0
        %v1955 = vadd.f32 0.0, %v1954
        %v1956 = vpop.f32.mrb[0].mxu0
        %1957 = vdwg.mxu0
        %v1958 = vsel %vm652, %v1950, -inf
        %1959 = vmax.xlane.f32.xlu0 %v1958
        %v1960 = vpop.xlane.xlu0 %1959
        %v1961 = vsel %vm652, %v1955, -inf
        %1962 = vmax.xlane.f32.xlu0 %v1961
        %v1963 = vpop.xlane.xlu0 %1962
        %v1964 = vsub.f32 %v1950, %v1960
        %v1965 = vsub.f32 %v1955, %v1963
        %v1966 = vmul.f32 %v1964, 1.442695
        %v1967 = vpow.pop %v1966
        %v1968 = vmul.f32 %v1965, 1.442695
        %v1969 = vpow.pop %v1968
        %v1970 = vsel %vm652, %v1967, 0.0
        %1971 = vadd.xlane.f32.xlu0 %v1970
        %v1972 = vpop.xlane.xlu0 %1971
        %v1973 = vsel %vm652, %v1969, 0.0
        %1974 = vadd.xlane.f32.xlu0 %v1973
        %v1975 = vpop.xlane.xlu0 %1974
        %1976 = vrot.lane.b32.xlu0 %v1861, 72
        %v1977 = vpop.permute.xlu0 %1976
        %1978 = vrot.lane.b32.xlu0 %v1862, 72
        %v1979 = vpop.permute.xlu0 %1978
        %v1983 = vsel %vm652, %v1967, 0
        %v1986 = vsel %vm652, %v1969, 0
        %1988 = vmatprep.subr.mxu0 0.0
        %1989 = vmatpush1.msra.mxu0 %v1977
        %1990 = vmatprep.subr.mxu0 0.0
        %1991 = vmatpush1.msra.mxu0 %v1979
        %1992 = vmatprep.subr.mxu0 0.0
        %1993 = vmatpush1.msra.mxu0 0.0
        %1994 = vmatprep.subr.mxu0 0.0
        %1995 = vmatpush1.msra.mxu0 0.0
        %1996 = vmatprep.subr.mxu0 0.0
        %1997 = vmatpush1.msra.mxu0 0.0
        %1998 = vmatprep.subr.mxu0 0.0
        %1999 = vmatpush1.msra.mxu0 0.0
        %2000 = vmatprep.subr.mxu0 0.0
        %2001 = vmatpush1.msra.mxu0 0.0
        %2002 = vmatprep.subr.mxu0 0.0
        %2003 = vmatpush1.msra.mxu0 0.0
        %2004 = vmatprep.subr.mxu0 0.0
        %2005 = vmatpush1.msra.mxu0 0.0
        %2006 = vmatprep.subr.mxu0 0.0
        %2007 = vmatpush1.msra.mxu0 0.0
        %2008 = vmatprep.subr.mxu0 0.0
        %2009 = vmatpush1.msra.mxu0 0.0
        %2010 = vmatprep.subr.mxu0 0.0
        %2011 = vmatpush1.msra.mxu0 0.0
        %2012 = vmatprep.subr.mxu0 0.0
        %2013 = vmatpush1.msra.mxu0 0.0
        %2014 = vmatprep.subr.mxu0 0.0
        %2015 = vmatpush1.msra.mxu0 0.0
        %2016 = vmatprep.subr.mxu0 0.0
        %2017 = vmatpush1.msra.mxu0 0.0
        %2018 = vmatprep.subr.mxu0 0.0
        %2019 = vmatpush1.msra.mxu0 0.0
        %2020 = vmatprep.subr.mxu0 0.0
        %2021 = vmatpush1.msra.mxu0 0.0
        %2022 = vmatprep.subr.mxu0 0.0
        %2023 = vmatpush1.msra.mxu0 0.0
        %2024 = vmatprep.subr.mxu0 0.0
        %2025 = vmatpush1.msra.mxu0 0.0
        %2026 = vmatprep.subr.mxu0 0.0
        %2027 = vmatpush1.msra.mxu0 0.0
        %2028 = vmatprep.subr.mxu0 0.0
        %2029 = vmatpush1.msra.mxu0 0.0
        %2030 = vmatprep.subr.mxu0 0.0
        %2031 = vmatpush1.msra.mxu0 0.0
        %2032 = vmatprep.subr.mxu0 0.0
        %2033 = vmatpush1.msra.mxu0 0.0
        %2034 = vmatprep.subr.mxu0 0.0
        %2035 = vmatpush1.msra.mxu0 0.0
        %2036 = vmatprep.subr.mxu0 0.0
        %2037 = vmatpush1.msra.mxu0 0.0
        %2038 = vmatprep.subr.mxu0 0.0
        %2039 = vmatpush1.msra.mxu0 0.0
        %2040 = vmatprep.subr.mxu0 0.0
        %2041 = vmatpush1.msra.mxu0 0.0
        %2042 = vmatprep.subr.mxu0 0.0
        %2043 = vmatpush1.msra.mxu0 0.0
        %2044 = vmatprep.subr.mxu0 0.0
        %2045 = vmatpush1.msra.mxu0 0.0
        %2046 = vmatprep.subr.mxu0 0.0
        %2047 = vmatpush1.msra.mxu0 0.0
        %2048 = vmatprep.subr.mxu0 0.0
        %2049 = vmatpush1.msra.mxu0 0.0
        %2050 = vmatprep.subr.mxu0 0.0
        %2051 = vmatpush1.msra.mxu0 0.0
        %2052 = vmatprep.mubr.f32.mxu0 0.0
        %2053 = vmatmul.mubr.f32.gmra.mrb[0].mxu0 %v1983
        %v2054 = vpop.f32.mrb[0].mxu0
        %v2055 = vadd.f32 0.0, %v2054
        %v2056 = vpop.f32.mrb[0].mxu0
        %2057 = vmatprep.mubr.f32.mxu0 0.0
        %2058 = vmatmul.mubr.f32.gmra.mrb[0].mxu0 %v1986
        %v2059 = vpop.f32.mrb[0].mxu0
        %v2060 = vadd.f32 0.0, %v2059
        %v2061 = vpop.f32.mrb[0].mxu0
        %2062 = vdwg.mxu0
        %v2063 = vrcp.pop %v1972
        %v2064 = vrcp.pop %v1975
        %v2065 = vmul.f32 %v2055, %v2063
        %v2066 = vmul.f32 %v2060, %v2064
        %2069 = vrot.lane.b32.xlu0 %v2065, 24
        %v2070 = vpop.permute.xlu0 %2069
        %2071 = vrot.lane.b32.xlu0 %v2066, 24
        %v2072 = vpop.permute.xlu0 %2071
        %vm2075 = vcmask 228544
        %2076 = vst.msk [vmem:[#allocation4] sm:$0xff] %vm2075, %v2070
        %2077 = vst.msk [vmem:[#allocation4 + $0x8] sm:$0xff] %vm2075, %v2072
        %v2078 = vld [vmem:[#allocation3] sm:$0xff]
        %v2079 = vld [vmem:[#allocation3 + $0x8] sm:$0xff]
        %v2080 = vld [vmem:[#allocation2] sm:$0xff]
        %v2081 = vld [vmem:[#allocation2 + $0x8] sm:$0xff]
        %2084 = vrot.lane.b32.xlu0 %v2078, 100
        %v2085 = vpop.permute.xlu0 %2084
        %2086 = vrot.lane.b32.xlu0 %v2079, 100
        %v2087 = vpop.permute.xlu0 %2086
        %2090 = vrot.lane.b32.xlu0 %v2080, 100
        %v2091 = vpop.permute.xlu0 %2090
        %2092 = vrot.lane.b32.xlu0 %v2081, 100
        %v2093 = vpop.permute.xlu0 %2092
        %v2094 = vsel %vm564, %v2085, 0
        %v2096 = vsel %vm564, %v2087, 0
        %v2098 = vsel %vm564, %v2091, 0
        %v2100 = vsel %vm564, %v2093, 0
        %2102 = vmatprep.subr.mxu0 0.0
        %2103 = vmatpush1.xpose.msra.mxu0 %v2098
        %2104 = vmatprep.subr.mxu0 0.0
        %2105 = vmatpush1.xpose.msra.mxu0 %v2100
        %2106 = vmatprep.subr.mxu0 0.0
        %2107 = vmatpush1.xpose.msra.mxu0 0.0
        %2108 = vmatprep.subr.mxu0 0.0
        %2109 = vmatpush1.xpose.msra.mxu0 0.0
        %2110 = vmatprep.subr.mxu0 0.0
        %2111 = vmatpush1.xpose.msra.mxu0 0.0
        %2112 = vmatprep.subr.mxu0 0.0
        %2113 = vmatpush1.xpose.msra.mxu0 0.0
        %2114 = vmatprep.subr.mxu0 0.0
        %2115 = vmatpush1.xpose.msra.mxu0 0.0
        %2116 = vmatprep.subr.mxu0 0.0
        %2117 = vmatpush1.xpose.msra.mxu0 0.0
        %2118 = vmatprep.subr.mxu0 0.0
        %2119 = vmatpush1.xpose.msra.mxu0 0.0
        %2120 = vmatprep.subr.mxu0 0.0
        %2121 = vmatpush1.xpose.msra.mxu0 0.0
        %2122 = vmatprep.subr.mxu0 0.0
        %2123 = vmatpush1.xpose.msra.mxu0 0.0
        %2124 = vmatprep.subr.mxu0 0.0
        %2125 = vmatpush1.xpose.msra.mxu0 0.0
        %2126 = vmatprep.subr.mxu0 0.0
        %2127 = vmatpush1.xpose.msra.mxu0 0.0
        %2128 = vmatprep.subr.mxu0 0.0
        %2129 = vmatpush1.xpose.msra.mxu0 0.0
        %2130 = vmatprep.subr.mxu0 0.0
        %2131 = vmatpush1.xpose.msra.mxu0 0.0
        %2132 = vmatprep.subr.mxu0 0.0
        %2133 = vmatpush1.xpose.msra.mxu0 0.0
        %2134 = vmatprep.subr.mxu0 0.0
        %2135 = vmatpush1.xpose.msra.mxu0 0.0
        %2136 = vmatprep.subr.mxu0 0.0
        %2137 = vmatpush1.xpose.msra.mxu0 0.0
        %2138 = vmatprep.subr.mxu0 0.0
        %2139 = vmatpush1.xpose.msra.mxu0 0.0
        %2140 = vmatprep.subr.mxu0 0.0
        %2141 = vmatpush1.xpose.msra.mxu0 0.0
        %2142 = vmatprep.subr.mxu0 0.0
        %2143 = vmatpush1.xpose.msra.mxu0 0.0
        %2144 = vmatprep.subr.mxu0 0.0
        %2145 = vmatpush1.xpose.msra.mxu0 0.0
        %2146 = vmatprep.subr.mxu0 0.0
        %2147 = vmatpush1.xpose.msra.mxu0 0.0
        %2148 = vmatprep.subr.mxu0 0.0
        %2149 = vmatpush1.xpose.msra.mxu0 0.0
        %2150 = vmatprep.subr.mxu0 0.0
        %2151 = vmatpush1.xpose.msra.mxu0 0.0
        %2152 = vmatprep.subr.mxu0 0.0
        %2153 = vmatpush1.xpose.msra.mxu0 0.0
        %2154 = vmatprep.subr.mxu0 0.0
        %2155 = vmatpush1.xpose.msra.mxu0 0.0
        %2156 = vmatprep.subr.mxu0 0.0
        %2157 = vmatpush1.xpose.msra.mxu0 0.0
        %2158 = vmatprep.subr.mxu0 0.0
        %2159 = vmatpush1.xpose.msra.mxu0 0.0
        %2160 = vmatprep.subr.mxu0 0.0
        %2161 = vmatpush1.xpose.msra.mxu0 0.0
        %2162 = vmatprep.subr.mxu0 0.0
        %2163 = vmatpush1.xpose.msra.mxu0 0.0
        %2164 = vmatprep.subr.mxu0 0.0
        %2165 = vmatpush1.xpose.msra.mxu0 0.0
        %2166 = vmatprep.mubr.f32.mxu0 0.0
        %2167 = vmatmul.mubr.f32.gmra.mrb[0].mxu0 %v2094
        %v2168 = vpop.f32.mrb[0].mxu0
        %v2169 = vadd.f32 0.0, %v2168
        %v2170 = vpop.f32.mrb[0].mxu0
        %2171 = vmatprep.mubr.f32.mxu0 0.0
        %2172 = vmatmul.mubr.f32.gmra.mrb[0].mxu0 %v2096
        %v2173 = vpop.f32.mrb[0].mxu0
        %v2174 = vadd.f32 0.0, %v2173
        %v2175 = vpop.f32.mrb[0].mxu0
        %2176 = vdwg.mxu0
        %v2177 = vsel %vm652, %v2169, -inf
        %2178 = vmax.xlane.f32.xlu0 %v2177
        %v2179 = vpop.xlane.xlu0 %2178
        %v2180 = vsel %vm652, %v2174, -inf
        %2181 = vmax.xlane.f32.xlu0 %v2180
        %v2182 = vpop.xlane.xlu0 %2181
        %v2183 = vsub.f32 %v2169, %v2179
        %v2184 = vsub.f32 %v2174, %v2182
        %v2185 = vmul.f32 %v2183, 1.442695
        %v2186 = vpow.pop %v2185
        %v2187 = vmul.f32 %v2184, 1.442695
        %v2188 = vpow.pop %v2187
        %v2189 = vsel %vm652, %v2186, 0.0
        %2190 = vadd.xlane.f32.xlu0 %v2189
        %v2191 = vpop.xlane.xlu0 %2190
        %v2192 = vsel %vm652, %v2188, 0.0
        %2193 = vadd.xlane.f32.xlu0 %v2192
        %v2194 = vpop.xlane.xlu0 %2193
        %2195 = vrot.lane.b32.xlu0 %v2080, 68
        %v2196 = vpop.permute.xlu0 %2195
        %2197 = vrot.lane.b32.xlu0 %v2081, 68
        %v2198 = vpop.permute.xlu0 %2197
        %v2202 = vsel %vm652, %v2186, 0
        %v2205 = vsel %vm652, %v2188, 0
        %2207 = vmatprep.subr.mxu0 0.0
        %2208 = vmatpush1.msra.mxu0 %v2196
        %2209 = vmatprep.subr.mxu0 0.0
        %2210 = vmatpush1.msra.mxu0 %v2198
        %2211 = vmatprep.subr.mxu0 0.0
        %2212 = vmatpush1.msra.mxu0 0.0
        %2213 = vmatprep.subr.mxu0 0.0
        %2214 = vmatpush1.msra.mxu0 0.0
        %2215 = vmatprep.subr.mxu0 0.0
        %2216 = vmatpush1.msra.mxu0 0.0
        %2217 = vmatprep.subr.mxu0 0.0
        %2218 = vmatpush1.msra.mxu0 0.0
        %2219 = vmatprep.subr.mxu0 0.0
        %2220 = vmatpush1.msra.mxu0 0.0
        %2221 = vmatprep.subr.mxu0 0.0
        %2222 = vmatpush1.msra.mxu0 0.0
        %2223 = vmatprep.subr.mxu0 0.0
        %2224 = vmatpush1.msra.mxu0 0.0
        %2225 = vmatprep.subr.mxu0 0.0
        %2226 = vmatpush1.msra.mxu0 0.0
        %2227 = vmatprep.subr.mxu0 0.0
        %2228 = vmatpush1.msra.mxu0 0.0
        %2229 = vmatprep.subr.mxu0 0.0
        %2230 = vmatpush1.msra.mxu0 0.0
        %2231 = vmatprep.subr.mxu0 0.0
        %2232 = vmatpush1.msra.mxu0 0.0
        %2233 = vmatprep.subr.mxu0 0.0
        %2234 = vmatpush1.msra.mxu0 0.0
        %2235 = vmatprep.subr.mxu0 0.0
        %2236 = vmatpush1.msra.mxu0 0.0
        %2237 = vmatprep.subr.mxu0 0.0
        %2238 = vmatpush1.msra.mxu0 0.0
        %2239 = vmatprep.subr.mxu0 0.0
        %2240 = vmatpush1.msra.mxu0 0.0
        %2241 = vmatprep.subr.mxu0 0.0
        %2242 = vmatpush1.msra.mxu0 0.0
        %2243 = vmatprep.subr.mxu0 0.0
        %2244 = vmatpush1.msra.mxu0 0.0
        %2245 = vmatprep.subr.mxu0 0.0
        %2246 = vmatpush1.msra.mxu0 0.0
        %2247 = vmatprep.subr.mxu0 0.0
        %2248 = vmatpush1.msra.mxu0 0.0
        %2249 = vmatprep.subr.mxu0 0.0
        %2250 = vmatpush1.msra.mxu0 0.0
        %2251 = vmatprep.subr.mxu0 0.0
        %2252 = vmatpush1.msra.mxu0 0.0
        %2253 = vmatprep.subr.mxu0 0.0
        %2254 = vmatpush1.msra.mxu0 0.0
        %2255 = vmatprep.subr.mxu0 0.0
        %2256 = vmatpush1.msra.mxu0 0.0
        %2257 = vmatprep.subr.mxu0 0.0
        %2258 = vmatpush1.msra.mxu0 0.0
        %2259 = vmatprep.subr.mxu0 0.0
        %2260 = vmatpush1.msra.mxu0 0.0
        %2261 = vmatprep.subr.mxu0 0.0
        %2262 = vmatpush1.msra.mxu0 0.0
        %2263 = vmatprep.subr.mxu0 0.0
        %2264 = vmatpush1.msra.mxu0 0.0
        %2265 = vmatprep.subr.mxu0 0.0
        %2266 = vmatpush1.msra.mxu0 0.0
        %2267 = vmatprep.subr.mxu0 0.0
        %2268 = vmatpush1.msra.mxu0 0.0
        %2269 = vmatprep.subr.mxu0 0.0
        %2270 = vmatpush1.msra.mxu0 0.0
        %2271 = vmatprep.mubr.f32.mxu0 0.0
        %2272 = vmatmul.mubr.f32.gmra.mrb[0].mxu0 %v2202
        %v2273 = vpop.f32.mrb[0].mxu0
        %v2274 = vadd.f32 0.0, %v2273
        %v2275 = vpop.f32.mrb[0].mxu0
        %2276 = vmatprep.mubr.f32.mxu0 0.0
        %2277 = vmatmul.mubr.f32.gmra.mrb[0].mxu0 %v2205
        %v2278 = vpop.f32.mrb[0].mxu0
        %v2279 = vadd.f32 0.0, %v2278
        %v2280 = vpop.f32.mrb[0].mxu0
        %2281 = vdwg.mxu0
        %v2282 = vrcp.pop %v2191
        %v2283 = vrcp.pop %v2194
        %v2284 = vmul.f32 %v2274, %v2282
        %v2285 = vmul.f32 %v2279, %v2283
        %2288 = vrot.lane.b32.xlu0 %v2284, 28
        %v2289 = vpop.permute.xlu0 %2288
        %2290 = vrot.lane.b32.xlu0 %v2285, 28
        %v2291 = vpop.permute.xlu0 %2290
        %vm2294 = vcmask 261344
        %2295 = vst.msk [vmem:[#allocation4] sm:$0xff] %vm2294, %v2289
        %2296 = vst.msk [vmem:[#allocation4 + $0x8] sm:$0xff] %vm2294, %v2291
        %v2297 = vld [vmem:[#allocation4] sm:$0xff]
        %v2298 = vld [vmem:[#allocation4 + $0x8] sm:$0xff]
        %v2299 = vld [vmem:[#allocation13] sm:$0xff]
        %v2300 = vld [vmem:[#allocation13 + $0x8] sm:$0xff]
        %v2301 = vld [vmem:[#allocation13 + $0x10] sm:$0xff]
        %v2302 = vld [vmem:[#allocation13 + $0x18] sm:$0xff]
        %v2303 = vld [vmem:[%s5] sm:$0x1]
        %v2305 = vlaneseq
        %v2306 = vshrl.u32 %v2305, 7
        %v2307 = vsub.s32 0, %v2306
        %v2308 = vrot.slane %v2303, %v2307
        %v2311 = vsel %vm474, %v2297, 0
        %v2314 = vsel %vm474, %v2298, 0
        %2316 = vmatprep.subr.mxu0 0.0
        %2317 = vmatpush1.msra.mxu0 %v2299
        %2318 = vmatprep.subr.mxu0 0.0
        %2319 = vmatpush1.msra.mxu0 %v2300
        %2320 = vmatprep.subr.mxu0 0.0
        %2321 = vmatpush1.msra.mxu0 %v2301
        %2322 = vmatprep.subr.mxu0 0.0
        %2323 = vmatpush1.msra.mxu0 %v2302
        %2324 = vmatprep.subr.mxu0 0.0
        %2325 = vmatpush1.msra.mxu0 0.0
        %2326 = vmatprep.subr.mxu0 0.0
        %2327 = vmatpush1.msra.mxu0 0.0
        %2328 = vmatprep.subr.mxu0 0.0
        %2329 = vmatpush1.msra.mxu0 0.0
        %2330 = vmatprep.subr.mxu0 0.0
        %2331 = vmatpush1.msra.mxu0 0.0
        %2332 = vmatprep.subr.mxu0 0.0
        %2333 = vmatpush1.msra.mxu0 0.0
        %2334 = vmatprep.subr.mxu0 0.0
        %2335 = vmatpush1.msra.mxu0 0.0
        %2336 = vmatprep.subr.mxu0 0.0
        %2337 = vmatpush1.msra.mxu0 0.0
        %2338 = vmatprep.subr.mxu0 0.0
        %2339 = vmatpush1.msra.mxu0 0.0
        %2340 = vmatprep.subr.mxu0 0.0
        %2341 = vmatpush1.msra.mxu0 0.0
        %2342 = vmatprep.subr.mxu0 0.0
        %2343 = vmatpush1.msra.mxu0 0.0
        %2344 = vmatprep.subr.mxu0 0.0
        %2345 = vmatpush1.msra.mxu0 0.0
        %2346 = vmatprep.subr.mxu0 0.0
        %2347 = vmatpush1.msra.mxu0 0.0
        %2348 = vmatprep.subr.mxu0 0.0
        %2349 = vmatpush1.msra.mxu0 0.0
        %2350 = vmatprep.subr.mxu0 0.0
        %2351 = vmatpush1.msra.mxu0 0.0
        %2352 = vmatprep.subr.mxu0 0.0
        %2353 = vmatpush1.msra.mxu0 0.0
        %2354 = vmatprep.subr.mxu0 0.0
        %2355 = vmatpush1.msra.mxu0 0.0
        %2356 = vmatprep.subr.mxu0 0.0
        %2357 = vmatpush1.msra.mxu0 0.0
        %2358 = vmatprep.subr.mxu0 0.0
        %2359 = vmatpush1.msra.mxu0 0.0
        %2360 = vmatprep.subr.mxu0 0.0
        %2361 = vmatpush1.msra.mxu0 0.0
        %2362 = vmatprep.subr.mxu0 0.0
        %2363 = vmatpush1.msra.mxu0 0.0
        %2364 = vmatprep.subr.mxu0 0.0
        %2365 = vmatpush1.msra.mxu0 0.0
        %2366 = vmatprep.subr.mxu0 0.0
        %2367 = vmatpush1.msra.mxu0 0.0
        %2368 = vmatprep.subr.mxu0 0.0
        %2369 = vmatpush1.msra.mxu0 0.0
        %2370 = vmatprep.subr.mxu0 0.0
        %2371 = vmatpush1.msra.mxu0 0.0
        %2372 = vmatprep.subr.mxu0 0.0
        %2373 = vmatpush1.msra.mxu0 0.0
        %2374 = vmatprep.subr.mxu0 0.0
        %2375 = vmatpush1.msra.mxu0 0.0
        %2376 = vmatprep.subr.mxu0 0.0
        %2377 = vmatpush1.msra.mxu0 0.0
        %2378 = vmatprep.subr.mxu0 0.0
        %2379 = vmatpush1.msra.mxu0 0.0
        %2380 = vmatprep.mubr.f32.mxu0 0.0
        %2381 = vmatmul.mubr.f32.gmra.mrb[0].mxu0 %v2311
        %v2382 = vpop.f32.mrb[0].mxu0
        %v2383 = vadd.f32 %v2308, %v2382
        %v2384 = vpop.f32.mrb[0].mxu0
        %2385 = vmatprep.mubr.f32.mxu0 0.0
        %2386 = vmatmul.mubr.f32.gmra.mrb[0].mxu0 %v2314
        %v2387 = vpop.f32.mrb[0].mxu0
        %v2388 = vadd.f32 %v2308, %v2387
        %v2389 = vpop.f32.mrb[0].mxu0
        %2390 = vdwg.mxu0
        %2391 = vst.msk [vmem:[%s370] sm:$0xff] %vm474, %v2383
        %2392 = vst.msk [vmem:[%s370 + $0x8] sm:$0xff] %vm474, %v2388
        %s2393 = sand.u32 %s187, 1
        %s2394 = scalar_lea.sflag [#allocation7], %s2393
        %s2395 = sand.u32 %s187, 1
        %s2396 = smul.addr %s2395, 16
        %s2397 = scalar_lea.vmem [#allocation14], %s2396
        // Predicated region
        $region69: #{tpu_custom_call.1} parent=43 // pred_check
          %p2398 = pneg %p197
        $region70: #{tpu_custom_call.1} parent=43 // pred_check_branch
          %2400 = sbr.rel (%p2398) target = $region72
        $region71: #{tpu_custom_call.1} parent=43 // pred_region
          %s2401 = smul.u32 2, %s32
          %s2403 = ssub.s32 256, 256
          %2404 = vsyncadd %s2394, %s2403
          %s2405 = smul.addr %s31, 2
          %s2406 = sadd.s32 %s2401, %s2405
          %s2407 = smul.addr %s2406, 128
          %s2408 = scalar_lea.hbm %s6, %s2407
          %s2409 = sshll.u32 %s2397, 4
          %s2410 = int_to_ptr.vmem [resolvable:$true] %s2409
          %2415 = dma.vmem_to_hbm [thread:$0]  %s2410, 256, %s2408, %s2394, 128, 128, 8
        $region72: #{tpu_custom_call.1} parent=43 // pred_fallthru
          _
      $region44: #{tpu_custom_call.1} parent=5 // pred_fallthru
        _
      %p2416 = scmp.le.s32.totalorder 2, %s22
      // Predicated region
      $region73: #{tpu_custom_call.1} parent=5 // pred_check
        %p2417 = pneg %p2416
      $region74: #{tpu_custom_call.1} parent=5 // pred_check_branch
        %2419 = sbr.rel (%p2417) target = $region76
      $region75: #{tpu_custom_call.1} parent=5 // pred_region
        %s2420 = ssub.s32 %s22, 2
        // Predicated region
        $region77: #{tpu_custom_call.1} parent=75 // pred_check
          %p2421 = pneg %p203
        $region78: #{tpu_custom_call.1} parent=75 // pred_check_branch
          %2423 = sbr.rel (%p2421) target = $region80
        $region79: #{tpu_custom_call.1} parent=75 // pred_region
          %s2424 = sand.u32 %s188, 1
          %s2425 = scalar_lea.sflag [#allocation7], %s2424
          %s2426 = sand.u32 %s188, 1
          %s2427 = smul.addr %s2426, 16
          %s2428 = scalar_lea.vmem [#allocation14], %s2427
          %2429 = dma.done %s2425, 256
        $region80: #{tpu_custom_call.1} parent=75 // pred_fallthru
          _
      $region76: #{tpu_custom_call.1} parent=5 // pred_fallthru
        _
    $region6: #{tpu_custom_call.1} parent=1 // loop_footer
      %s26 = sadd.s32 1, %s22
    $region7: #{tpu_custom_call.1} parent=1 // loop_footer_branch
      %21 = sbr.rel target = $region3
    $region8: #{tpu_custom_call.1} parent=1 // loop_exit
      _
    %2430 = vsyncpa [#allocation6], 1
    %s2431 = scalar_lea.sflag [#allocation6], 1
    %2432 = vsyncpa %s2431, 1
    %2433 = vsyncpa [#allocation9], 1
    %s2434 = scalar_lea.sflag [#allocation9], 1
    %2435 = vsyncpa %s2434, 1
    %2436 = vsyncpa [#allocation12], 1
    %2437 = vsyncpa [#allocation7], 1
    %s2438 = scalar_lea.sflag [#allocation7], 1
    %2439 = vsyncpa %s2438, 1

</llo_original>
